<compile_context>
chip_gen: v6e
topology: v6e:2x2x1
jax: 0.10.0
libtpu: 0.0.40
codegen_flags: <defaults>
</compile_context>

<pallas_src>
import jax
import jax.numpy as jnp
from jax.experimental import pallas as pl
from jax.experimental.pallas import tpu as pltpu


H_PAD = 128  # pad hidden channels to one full lane slab (lane-dense stores)


def encoder_cat_kernel(adj_top_ref, adj_bot_ref, x_ref,
                       w_conv_ref, b_conv_ref, alpha_ref,
                       wc1_ref, wc2_ref, b_cat_ref,
                       out_ref,
                       acc1_ref, acc2_ref):
    """grid = (row tile i over each node half, k tile over adjacency columns)."""
    k = pl.program_id(1)

    @pl.when(k == 0)
    def _init():
        acc1_ref[...] = jnp.zeros_like(acc1_ref)
        acc2_ref[...] = jnp.zeros_like(acc2_ref)

    # ---- (A @ X) accumulation: bf16 operands, f32 accumulation on MXU ----
    x_blk = x_ref[...]                                              # [tk, C_in] bf16
    acc1_ref[...] += jnp.dot(adj_top_ref[...], x_blk,
                             preferred_element_type=jnp.float32)    # [tm, C_in]
    acc2_ref[...] += jnp.dot(adj_bot_ref[...], x_blk,
                             preferred_element_type=jnp.float32)    # [tm, C_in]

    @pl.when(k == pl.num_programs(1) - 1)
    def _finalize():
        def head(acc):
            # GCNConv lin (+ bias), then per-channel PReLU.
            h = jnp.dot(acc.astype(jnp.bfloat16), w_conv_ref[...],
                        preferred_element_type=jnp.float32) + b_conv_ref[...]
            return jnp.where(h > 0, h, alpha_ref[...] * h)

        h1 = head(acc1_ref[...])                                    # first half rows
        h2 = head(acc2_ref[...])                                    # second half rows

        out = (jnp.dot(h1.astype(jnp.bfloat16), wc1_ref[...],
                       preferred_element_type=jnp.float32)
               + jnp.dot(h2.astype(jnp.bfloat16), wc2_ref[...],
                         preferred_element_type=jnp.float32)
               + b_cat_ref[...])
        out_ref[...] = out.astype(out_ref.dtype)


def double_layered_encoder_cat(x, edge_index, edge_weight, params,
                               *, tm=128, tk=128):
    """x: [N, C_in] f32, edge_index: [2, E] int32 (row0=src, row1=dst),
    edge_weight: [E] f32.  Returns [N//2, hidden] f32."""
    N, c_in = x.shape
    hid = params["w_conv"].shape[1]
    assert N % 2 == 0, "node count must be even for the half-split"
    n_half = N // 2
    assert n_half % tm == 0 and N % tk == 0, "pad N so the tiles divide evenly"

    # Glue: densify the sparse graph, adj[dst, src] = edge_weight (summing
    # duplicates in f32), then cast to bf16 to halve the O(N^2) HBM traffic.
    src, dst = edge_index[0], edge_index[1]
    adj = (jnp.zeros((N, N), jnp.float32)
           .at[dst, src].add(edge_weight.astype(jnp.float32))
           .astype(jnp.bfloat16))

    def pad_h(a):  # zero-pad the hidden (last) dim to H_PAD lanes
        return jnp.pad(a, [(0, 0)] * (a.ndim - 1) + [(0, H_PAD - hid)])

    x_bf = x.astype(jnp.bfloat16)                                        # [N, C_in]
    w_conv = pad_h(params["w_conv"]).astype(jnp.bfloat16)                # [C_in, H_PAD]
    b_conv = pad_h(params["b_conv"][None, :]).astype(jnp.float32)        # [1, H_PAD]
    alpha = pad_h(params["alpha"][None, :]).astype(jnp.float32)          # [1, H_PAD]
    wc1 = jnp.pad(params["wc1"],
                  ((0, H_PAD - hid), (0, H_PAD - hid))).astype(jnp.bfloat16)
    wc2 = jnp.pad(params["wc2"],
                  ((0, H_PAD - hid), (0, H_PAD - hid))).astype(jnp.bfloat16)
    b_cat = pad_h(params["b_cat"][None, :]).astype(jnp.float32)          # [1, H_PAD]

    nhb = n_half // tm          # block-row offset of the second node half
    grid = (n_half // tm, N // tk)

    def const_spec(shape):
        return pl.BlockSpec(shape, lambda i, k: (0,) * len(shape))

    out_pad = pl.pallas_call(
        encoder_cat_kernel,
        out_shape=jax.ShapeDtypeStruct((n_half, H_PAD), jnp.float32),
        grid_spec=pltpu.PrefetchScalarGridSpec(
            num_scalar_prefetch=0,
            grid=grid,
            in_specs=[
                pl.BlockSpec((tm, tk), lambda i, k: (i, k)),        # adj, top half rows
                pl.BlockSpec((tm, tk), lambda i, k: (i + nhb, k)),  # adj, bottom half rows
                pl.BlockSpec((tk, c_in), lambda i, k: (k, 0)),      # x
                const_spec((c_in, H_PAD)),                          # w_conv
                const_spec((1, H_PAD)),                             # b_conv
                const_spec((1, H_PAD)),                             # alpha
                const_spec((H_PAD, H_PAD)),                         # wc1
                const_spec((H_PAD, H_PAD)),                         # wc2
                const_spec((1, H_PAD)),                             # b_cat
            ],
            out_specs=pl.BlockSpec((tm, H_PAD), lambda i, k: (i, 0)),
            scratch_shapes=[pltpu.VMEM((tm, c_in), jnp.float32),
                            pltpu.VMEM((tm, c_in), jnp.float32)],
        ),
        compiler_params=pltpu.CompilerParams(
            dimension_semantics=("parallel", "arbitrary"),
            vmem_limit_bytes=32 * 1024 * 1024),
    )(adj, adj, x_bf, w_conv, b_conv, alpha, wc1, wc2, b_cat)

    return out_pad[:, :hid]


def _reference(x, edge_index, edge_weight, params):
    """Pure-JAX f32 reference mirroring the PyTorch forward."""
    N = x.shape[0]
    adj = jnp.zeros((N, N), jnp.float32).at[edge_index[1], edge_index[0]].add(
        edge_weight)
    h = adj @ (x @ params["w_conv"]) + params["b_conv"]
    h = jnp.where(h > 0, h, params["alpha"] * h)
    n_half = N // 2
    n1, n2 = h[:n_half], h[n_half:]
    return n1 @ params["wc1"] + n2 @ params["wc2"] + params["b_cat"]


if __name__ == "__main__":
    # Small shapes consistent with the module's forward (N even, tiles divide).
    N, C_IN, HID, E = 512, 8, 32, 2048

    key = jax.random.PRNGKey(0)
    k_x, k_ei, k_ew, k_w, k_b, k_wc, k_bc = jax.random.split(key, 7)

    x = jax.random.normal(k_x, (N, C_IN), jnp.float32)
    edge_index = jax.random.randint(k_ei, (2, E), 0, N, jnp.int32)
    edge_weight = jax.random.uniform(k_ew, (E,), jnp.float32)

    w_conv = jax.random.normal(k_w, (C_IN, HID), jnp.float32) * 0.1   # GCNConv lin weight [C_in, H]
    b_conv = jax.random.normal(k_b, (HID,), jnp.float32) * 0.01       # GCNConv bias
    alpha = jnp.full((HID,), 0.25, jnp.float32)                       # PReLU per-channel slope
    w_cat = jax.random.normal(k_wc, (2 * HID, HID), jnp.float32) * 0.1  # CAT Linear(2H -> H) as [2H, H]
    b_cat = jax.random.normal(k_bc, (HID,), jnp.float32) * 0.01

    params = {
        "w_conv": w_conv,
        "b_conv": b_conv,
        "alpha": alpha,
        "wc1": w_cat[:HID],
        "wc2": w_cat[HID:],
        "b_cat": b_cat,
    }

    out = double_layered_encoder_cat(x, edge_index, edge_weight, params)
    out = jax.block_until_ready(out)

    ref = _reference(x, edge_index, edge_weight, params)
    assert out.shape == (N // 2, HID)
    # bf16 MXU operands (f32 accumulation) -> loosened tolerance vs f32 reference.
    assert jnp.allclose(out, ref, atol=1e-1, rtol=5e-2), (
        float(jnp.max(jnp.abs(out - ref))))

    print("KERNEL_OK")
</pallas_src>

<mosaic_0001>
module attributes {stable_mosaic.version = 11 : i64} {
  func.func @encoder_cat_kernel(%arg0: i32, %arg1: i32, %arg2: memref<128x128xbf16, #tpu.memory_space<vmem>>, %arg3: memref<128x128xbf16, #tpu.memory_space<vmem>>, %arg4: memref<128x8xbf16, #tpu.memory_space<vmem>>, %arg5: memref<8x128xbf16, #tpu.memory_space<vmem>>, %arg6: memref<1x128xf32, #tpu.memory_space<vmem>>, %arg7: memref<1x128xf32, #tpu.memory_space<vmem>>, %arg8: memref<128x128xbf16, #tpu.memory_space<vmem>>, %arg9: memref<128x128xbf16, #tpu.memory_space<vmem>>, %arg10: memref<1x128xf32, #tpu.memory_space<vmem>>, %arg11: memref<128x128xf32, #tpu.memory_space<vmem>>, %arg12: memref<128x8xf32, #tpu.memory_space<vmem>>, %arg13: memref<128x8xf32, #tpu.memory_space<vmem>>) attributes {dimension_semantics = [#tpu.dimension_semantics<parallel>, #tpu.dimension_semantics<arbitrary>], iteration_bounds = array<i64: 2, 4>, scalar_prefetch = 0 : i64, scratch_operands = 2 : i64, tpu.core_type = #tpu.core_type<tc>, window_params = [{transform_indices = @transform_0, window_bounds = array<i64: 128, 128>}, {transform_indices = @transform_1, window_bounds = array<i64: 128, 128>}, {transform_indices = @transform_2, window_bounds = array<i64: 128, 8>}, {pipeline_mode = #tpu.pipeline_mode<synchronous>, transform_indices = @transform_3, window_bounds = array<i64: 8, 128>}, {pipeline_mode = #tpu.pipeline_mode<synchronous>, transform_indices = @transform_4, window_bounds = array<i64: 1, 128>}, {pipeline_mode = #tpu.pipeline_mode<synchronous>, transform_indices = @transform_5, window_bounds = array<i64: 1, 128>}, {pipeline_mode = #tpu.pipeline_mode<synchronous>, transform_indices = @transform_6, window_bounds = array<i64: 128, 128>}, {pipeline_mode = #tpu.pipeline_mode<synchronous>, transform_indices = @transform_7, window_bounds = array<i64: 128, 128>}, {pipeline_mode = #tpu.pipeline_mode<synchronous>, transform_indices = @transform_8, window_bounds = array<i64: 1, 128>}, {transform_indices = @transform_9, window_bounds = array<i64: 128, 128>}]} {
    %c0_i32 = arith.constant 0 : i32
    %0 = arith.cmpi eq, %arg1, %c0_i32 : i32
    %1 = arith.extui %0 : i1 to i32
    %c0_i32_0 = arith.constant 0 : i32
    %2 = arith.cmpi ne, %1, %c0_i32_0 : i32
    scf.if %2 {
      %cst_16 = arith.constant 0.000000e+00 : f32
      %17 = vector.broadcast %cst_16 : f32 to vector<128x8xf32>
      %c0_17 = arith.constant 0 : index
      %c0_18 = arith.constant 0 : index
      %18 = vector.load %arg12[%c0_17, %c0_18] : memref<128x8xf32, #tpu.memory_space<vmem>>, vector<128x8xf32>
      tpu.vector_store %arg12[%c0_17, %c0_18], %17 {strides = array<i32>} : memref<128x8xf32, #tpu.memory_space<vmem>>, vector<128x8xf32>,
      %cst_19 = arith.constant 0.000000e+00 : f32
      %19 = vector.broadcast %cst_19 : f32 to vector<128x8xf32>
      %c0_20 = arith.constant 0 : index
      %c0_21 = arith.constant 0 : index
      %20 = vector.load %arg13[%c0_20, %c0_21] : memref<128x8xf32, #tpu.memory_space<vmem>>, vector<128x8xf32>
      tpu.vector_store %arg13[%c0_20, %c0_21], %19 {strides = array<i32>} : memref<128x8xf32, #tpu.memory_space<vmem>>, vector<128x8xf32>,
    } else {
    }
    %c0 = arith.constant 0 : index
    %c0_1 = arith.constant 0 : index
    %3 = vector.load %arg4[%c0, %c0_1] : memref<128x8xbf16, #tpu.memory_space<vmem>>, vector<128x8xbf16>
    %c0_2 = arith.constant 0 : index
    %c0_3 = arith.constant 0 : index
    %4 = vector.load %arg12[%c0_2, %c0_3] : memref<128x8xf32, #tpu.memory_space<vmem>>, vector<128x8xf32>
    %c0_4 = arith.constant 0 : index
    %c0_5 = arith.constant 0 : index
    %5 = vector.load %arg2[%c0_4, %c0_5] : memref<128x128xbf16, #tpu.memory_space<vmem>>, vector<128x128xbf16>
    %cst = arith.constant dense<0.000000e+00> : vector<128x8xf32>
    %6 = tpu.matmul %5, %3, %cst {dimension_numbers = #tpu.dot_dimension_numbers<[1], [0], [0], [1], [0, 0, 1, 1], [], []>} : vector<128x128xbf16>, vector<128x8xbf16>, vector<128x8xf32> -> vector<128x8xf32>
    %7 = arith.addf %4, %6 : vector<128x8xf32>
    %c0_6 = arith.constant 0 : index
    %c0_7 = arith.constant 0 : index
    %8 = vector.load %arg12[%c0_6, %c0_7] : memref<128x8xf32, #tpu.memory_space<vmem>>, vector<128x8xf32>
    tpu.vector_store %arg12[%c0_6, %c0_7], %7 {strides = array<i32>} : memref<128x8xf32, #tpu.memory_space<vmem>>, vector<128x8xf32>,
    %c0_8 = arith.constant 0 : index
    %c0_9 = arith.constant 0 : index
    %9 = vector.load %arg13[%c0_8, %c0_9] : memref<128x8xf32, #tpu.memory_space<vmem>>, vector<128x8xf32>
    %c0_10 = arith.constant 0 : index
    %c0_11 = arith.constant 0 : index
    %10 = vector.load %arg3[%c0_10, %c0_11] : memref<128x128xbf16, #tpu.memory_space<vmem>>, vector<128x128xbf16>
    %cst_12 = arith.constant dense<0.000000e+00> : vector<128x8xf32>
    %11 = tpu.matmul %10, %3, %cst_12 {dimension_numbers = #tpu.dot_dimension_numbers<[1], [0], [0], [1], [0, 0, 1, 1], [], []>} : vector<128x128xbf16>, vector<128x8xbf16>, vector<128x8xf32> -> vector<128x8xf32>
    %12 = arith.addf %9, %11 : vector<128x8xf32>
    %c0_13 = arith.constant 0 : index
    %c0_14 = arith.constant 0 : index
    %13 = vector.load %arg13[%c0_13, %c0_14] : memref<128x8xf32, #tpu.memory_space<vmem>>, vector<128x8xf32>
    tpu.vector_store %arg13[%c0_13, %c0_14], %12 {strides = array<i32>} : memref<128x8xf32, #tpu.memory_space<vmem>>, vector<128x8xf32>,
    %c3_i32 = arith.constant 3 : i32
    %14 = arith.cmpi eq, %arg1, %c3_i32 : i32
    %15 = arith.extui %14 : i1 to i32
    %c0_i32_15 = arith.constant 0 : i32
    %16 = arith.cmpi ne, %15, %c0_i32_15 : i32
    scf.if %16 {
      %c0_16 = arith.constant 0 : index
      %c0_17 = arith.constant 0 : index
      %17 = vector.load %arg12[%c0_16, %c0_17] : memref<128x8xf32, #tpu.memory_space<vmem>>, vector<128x8xf32>
      %18 = arith.truncf %17 : vector<128x8xf32> to vector<128x8xbf16>
      %c0_18 = arith.constant 0 : index
      %c0_19 = arith.constant 0 : index
      %19 = vector.load %arg5[%c0_18, %c0_19] : memref<8x128xbf16, #tpu.memory_space<vmem>>, vector<8x128xbf16>
      %cst_20 = arith.constant dense<0.000000e+00> : vector<128x128xf32>
      %20 = tpu.matmul %18, %19, %cst_20 {dimension_numbers = #tpu.dot_dimension_numbers<[1], [0], [0], [1], [0, 0, 1, 1], [], []>} : vector<128x8xbf16>, vector<8x128xbf16>, vector<128x128xf32> -> vector<128x128xf32>
      %c0_21 = arith.constant 0 : index
      %c0_22 = arith.constant 0 : index
      %21 = vector.load %arg6[%c0_21, %c0_22] : memref<1x128xf32, #tpu.memory_space<vmem>>, vector<1x128xf32>
      %22 = vector.broadcast %21 : vector<1x128xf32> to vector<128x128xf32>
      %23 = arith.addf %20, %22 : vector<128x128xf32>
      %cst_23 = arith.constant 0.000000e+00 : f32
      %24 = vector.broadcast %cst_23 : f32 to vector<128x128xf32>
      %25 = arith.cmpf ogt, %23, %24 : vector<128x128xf32>
      %c0_24 = arith.constant 0 : index
      %c0_25 = arith.constant 0 : index
      %26 = vector.load %arg7[%c0_24, %c0_25] : memref<1x128xf32, #tpu.memory_space<vmem>>, vector<1x128xf32>
      %27 = vector.broadcast %26 : vector<1x128xf32> to vector<128x128xf32>
      %28 = arith.mulf %27, %23 : vector<128x128xf32>
      %29 = arith.select %25, %23, %28 : vector<128x128xi1>, vector<128x128xf32>
      %c0_26 = arith.constant 0 : index
      %c0_27 = arith.constant 0 : index
      %30 = vector.load %arg13[%c0_26, %c0_27] : memref<128x8xf32, #tpu.memory_space<vmem>>, vector<128x8xf32>
      %31 = arith.truncf %30 : vector<128x8xf32> to vector<128x8xbf16>
      %c0_28 = arith.constant 0 : index
      %c0_29 = arith.constant 0 : index
      %32 = vector.load %arg5[%c0_28, %c0_29] : memref<8x128xbf16, #tpu.memory_space<vmem>>, vector<8x128xbf16>
      %cst_30 = arith.constant dense<0.000000e+00> : vector<128x128xf32>
      %33 = tpu.matmul %31, %32, %cst_30 {dimension_numbers = #tpu.dot_dimension_numbers<[1], [0], [0], [1], [0, 0, 1, 1], [], []>} : vector<128x8xbf16>, vector<8x128xbf16>, vector<128x128xf32> -> vector<128x128xf32>
      %c0_31 = arith.constant 0 : index
      %c0_32 = arith.constant 0 : index
      %34 = vector.load %arg6[%c0_31, %c0_32] : memref<1x128xf32, #tpu.memory_space<vmem>>, vector<1x128xf32>
      %35 = vector.broadcast %34 : vector<1x128xf32> to vector<128x128xf32>
      %36 = arith.addf %33, %35 : vector<128x128xf32>
      %cst_33 = arith.constant 0.000000e+00 : f32
      %37 = vector.broadcast %cst_33 : f32 to vector<128x128xf32>
      %38 = arith.cmpf ogt, %36, %37 : vector<128x128xf32>
      %c0_34 = arith.constant 0 : index
      %c0_35 = arith.constant 0 : index
      %39 = vector.load %arg7[%c0_34, %c0_35] : memref<1x128xf32, #tpu.memory_space<vmem>>, vector<1x128xf32>
      %40 = vector.broadcast %39 : vector<1x128xf32> to vector<128x128xf32>
      %41 = arith.mulf %40, %36 : vector<128x128xf32>
      %42 = arith.select %38, %36, %41 : vector<128x128xi1>, vector<128x128xf32>
      %43 = arith.truncf %29 : vector<128x128xf32> to vector<128x128xbf16>
      %c0_36 = arith.constant 0 : index
      %c0_37 = arith.constant 0 : index
      %44 = vector.load %arg8[%c0_36, %c0_37] : memref<128x128xbf16, #tpu.memory_space<vmem>>, vector<128x128xbf16>
      %cst_38 = arith.constant dense<0.000000e+00> : vector<128x128xf32>
      %45 = tpu.matmul %43, %44, %cst_38 {dimension_numbers = #tpu.dot_dimension_numbers<[1], [0], [0], [1], [0, 0, 1, 1], [], []>} : vector<128x128xbf16>, vector<128x128xbf16>, vector<128x128xf32> -> vector<128x128xf32>
      %46 = arith.truncf %42 : vector<128x128xf32> to vector<128x128xbf16>
      %c0_39 = arith.constant 0 : index
      %c0_40 = arith.constant 0 : index
      %47 = vector.load %arg9[%c0_39, %c0_40] : memref<128x128xbf16, #tpu.memory_space<vmem>>, vector<128x128xbf16>
      %cst_41 = arith.constant dense<0.000000e+00> : vector<128x128xf32>
      %48 = tpu.matmul %46, %47, %cst_41 {dimension_numbers = #tpu.dot_dimension_numbers<[1], [0], [0], [1], [0, 0, 1, 1], [], []>} : vector<128x128xbf16>, vector<128x128xbf16>, vector<128x128xf32> -> vector<128x128xf32>
      %49 = arith.addf %45, %48 : vector<128x128xf32>
      %c0_42 = arith.constant 0 : index
      %c0_43 = arith.constant 0 : index
      %50 = vector.load %arg10[%c0_42, %c0_43] : memref<1x128xf32, #tpu.memory_space<vmem>>, vector<1x128xf32>
      %51 = vector.broadcast %50 : vector<1x128xf32> to vector<128x128xf32>
      %52 = arith.addf %49, %51 : vector<128x128xf32>
      %c0_44 = arith.constant 0 : index
      %c0_45 = arith.constant 0 : index
      %53 = vector.load %arg11[%c0_44, %c0_45] : memref<128x128xf32, #tpu.memory_space<vmem>>, vector<128x128xf32>
      tpu.vector_store %arg11[%c0_44, %c0_45], %52 {strides = array<i32>} : memref<128x128xf32, #tpu.memory_space<vmem>>, vector<128x128xf32>,
    } else {
    }
    return
  }
  func.func @transform_0(%arg0: i32, %arg1: i32) -> (i32, i32) {
    %c0_i32 = arith.constant 0 : i32
    return %arg0, %arg1 : i32, i32
  }
  func.func @transform_1(%arg0: i32, %arg1: i32) -> (i32, i32) {
    %c2_i32 = arith.constant 2 : i32
    %0 = arith.addi %arg0, %c2_i32 : i32
    %c0_i32 = arith.constant 0 : i32
    return %0, %arg1 : i32, i32
  }
  func.func @transform_2(%arg0: i32, %arg1: i32) -> (i32, i32) {
    %c0_i32 = arith.constant 0 : i32
    %c0_i32_0 = arith.constant 0 : i32
    return %arg1, %c0_i32 : i32, i32
  }
  func.func @transform_3(%arg0: i32, %arg1: i32) -> (i32, i32) {
    %c0_i32 = arith.constant 0 : i32
    %c0_i32_0 = arith.constant 0 : i32
    %c0_i32_1 = arith.constant 0 : i32
    return %c0_i32, %c0_i32_0 : i32, i32
  }
  func.func @transform_4(%arg0: i32, %arg1: i32) -> (i32, i32) {
    %c0_i32 = arith.constant 0 : i32
    %c0_i32_0 = arith.constant 0 : i32
    %c0_i32_1 = arith.constant 0 : i32
    return %c0_i32, %c0_i32_0 : i32, i32
  }
  func.func @transform_5(%arg0: i32, %arg1: i32) -> (i32, i32) {
    %c0_i32 = arith.constant 0 : i32
    %c0_i32_0 = arith.constant 0 : i32
    %c0_i32_1 = arith.constant 0 : i32
    return %c0_i32, %c0_i32_0 : i32, i32
  }
  func.func @transform_6(%arg0: i32, %arg1: i32) -> (i32, i32) {
    %c0_i32 = arith.constant 0 : i32
    %c0_i32_0 = arith.constant 0 : i32
    %c0_i32_1 = arith.constant 0 : i32
    return %c0_i32, %c0_i32_0 : i32, i32
  }
  func.func @transform_7(%arg0: i32, %arg1: i32) -> (i32, i32) {
    %c0_i32 = arith.constant 0 : i32
    %c0_i32_0 = arith.constant 0 : i32
    %c0_i32_1 = arith.constant 0 : i32
    return %c0_i32, %c0_i32_0 : i32, i32
  }
  func.func @transform_8(%arg0: i32, %arg1: i32) -> (i32, i32) {
    %c0_i32 = arith.constant 0 : i32
    %c0_i32_0 = arith.constant 0 : i32
    %c0_i32_1 = arith.constant 0 : i32
    return %c0_i32, %c0_i32_0 : i32, i32
  }
  func.func @transform_9(%arg0: i32, %arg1: i32) -> (i32, i32) {
    %c0_i32 = arith.constant 0 : i32
    %c0_i32_0 = arith.constant 0 : i32
    return %arg0, %c0_i32 : i32, i32
  }
}

</mosaic_0001>

<llo_original>
// kernel: tpu_custom_call.1
$region0: #{tpu_custom_call.1}
  #allocation0 [shape = 'u32[]', space=smem, size = 0x4, offset = 0x4, fixed_abs, tag = 'smem constant byte address 0x4 - core index']
  #allocation1 [shape = 'u32[144,128]{1,0:T(1,128)}', space=vmem, size = 0x12000, scoped, tag = 'internal scratch']
  #allocation2 [shape = 'f32[128,8]{1,0:T(8,128)}', space=vmem, size = 0x10000, scoped, tag = 'scratch operand']
  #allocation3 [shape = 'f32[128,8]{1,0:T(8,128)}', space=vmem, size = 0x10000, scoped, tag = 'scratch operand']
  %s0 = inlined_call_operand.hbm [shape: bf16[512,512], index: 0, kind: input, shape index: {}]
  %s1 = inlined_call_operand.hbm [shape: bf16[512,512], index: 1, kind: input, shape index: {}]
  %s2 = inlined_call_operand.vmem [shape: bf16[512,8], index: 2, kind: input, shape index: {}]
  %s3 = inlined_call_operand.vmem [shape: bf16[8,128], index: 3, kind: input, shape index: {}]
  %s4 = inlined_call_operand.vmem [shape: f32[1,128], index: 4, kind: input, shape index: {}]
  %s5 = inlined_call_operand.vmem [shape: f32[1,128], index: 5, kind: input, shape index: {}]
  %s6 = inlined_call_operand.vmem [shape: bf16[128,128], index: 6, kind: input, shape index: {}]
  %s7 = inlined_call_operand.vmem [shape: bf16[128,128], index: 7, kind: input, shape index: {}]
  %s8 = inlined_call_operand.vmem [shape: f32[1,128], index: 8, kind: input, shape index: {}]
  %s9 = inlined_call_operand.hbm [shape: f32[256,128], index: 9, kind: output, shape index: {}]
  %s10 = sld [smem:[#allocation0]]
  $region85: #{tpu_custom_call.1} parent=0
    _
  %s12 = ssub.s32 1, %s10
  %s13 = scalar_select 0, %s12, %s10
  $region1: #{tpu_custom_call.1} parent=0
    #allocation4 [shape = 'u8[65536]{0}', space=vmem, size = 0x10000, scoped, tag = 'input window, operand 0']
    #allocation5 [shape = 's32[2]{0}', space=sflag, size = 0x8, scoped, tag = 'scoped memory for tpu_custom_call.1']
    #allocation6 [shape = 's32[2]{0}', space=sflag, size = 0x8, scoped, tag = 'scoped memory for tpu_custom_call.1']
    #allocation7 [shape = 'u8[65536]{0}', space=vmem, size = 0x10000, scoped, tag = 'input window, operand 1']
    #allocation8 [shape = 's32[2]{0}', space=sflag, size = 0x8, scoped, tag = 'scoped memory for tpu_custom_call.1']
    #allocation9 [shape = 'u8[131072]{0}', space=vmem, size = 0x20000, scoped, tag = 'output window, operand 0']
    %14 = vsyncpa [#allocation5], 0
    %s15 = scalar_lea.sflag [#allocation5], 1
    %16 = vsyncpa %s15, 0
    %17 = vsyncpa [#allocation8], 0
    %s18 = scalar_lea.sflag [#allocation8], 1
    %19 = vsyncpa %s18, 0
    %20 = vsyncpa [#allocation6], 0
    %s21 = scalar_lea.sflag [#allocation6], 1
    %22 = vsyncpa %s21, 0
    loop: start=0, step=1, limit=10
    $region2: #{tpu_custom_call.1} parent=1 // loop_pre_header
      _
    $region3: #{tpu_custom_call.1} parent=1 // loop_header
      %s24 = sphi 0, %s28
      %p25 = scmp.ge.s32.totalorder %s24, 10
      %s31 = sphi 0, %s43
      %s32 = sphi 0, %s39
      %s33 = sphi 0, %s31
      %s34 = sphi 0, %s32
      %s35 = sphi 0, %s33
      %s36 = sphi 0, %s34
      %s48 = sphi 0, %s50
      %s51 = sphi 0, %s48
      %s52 = sphi 0, %s51
      %s68 = sphi 0, %s52
      %s78 = sphi 0, %s80
      %s81 = sphi 0, %s78
      %s82 = sphi 0, %s81
      %s98 = sphi 0, %s82
      %s104 = sphi 0, %s106
      %s107 = sphi 0, %s104
      %s108 = sphi 0, %s107
      %s124 = sphi 0, %s108
      %s128 = sphi 0, %s128
      %s130 = sphi 0, %s128
      %s131 = sphi 0, %s130
      %s145 = sphi 0, %s131
      %s149 = sphi 0, %s149
      %s151 = sphi 0, %s149
      %s152 = sphi 0, %s151
      %s166 = sphi 0, %s152
      %s170 = sphi 0, %s170
      %s172 = sphi 0, %s170
      %s173 = sphi 0, %s172
      %s187 = sphi 0, %s173
      %s191 = sphi 0, %s191
      %s193 = sphi 0, %s191
      %s194 = sphi 0, %s193
      %s208 = sphi 0, %s194
      %s212 = sphi 0, %s212
      %s214 = sphi 0, %s212
      %s215 = sphi 0, %s214
      %s229 = sphi 0, %s215
      %s233 = sphi 0, %s233
      %s235 = sphi 0, %s233
      %s236 = sphi 0, %s235
      %s250 = sphi 0, %s236
      %s256 = sphi 0, %s258
      %s259 = sphi 0, %s256
      %s260 = sphi 0, %s259
      %s276 = sphi 0, %s260
    $region4: #{tpu_custom_call.1} parent=1 // loop_header_branch
      %27 = sbr.rel (%p25) target = $region8
    $region5: #{tpu_custom_call.1} parent=1 // loop_body
      %s29 = ssub.s32 %s24, 1
      %s30 = ssub.s32 %s24, 2
      %s37 = sadd.s32 1, %s32
      %p38 = scmp.ge.s32.totalorder %s37, 4
      %s39 = scalar_select %p38, 0, %s37
      %s40 = sadd.s32 1, %s31
      %s41 = scalar_select %p38, %s40, %s31
      %p42 = scmp.ge.s32.totalorder %s41, 2
      %s43 = scalar_select %p42, 0, %s41
      %s44 = ssub.s32 %s31, %s43
      %s45 = ssub.s32 %s32, %s39
      %s46 = sor.u32 %s44, %s45
      %p47 = scmp.eq.s32.totalorder %s46, 0
      %s49 = sadd.s32 %s48, 1
      %s50 = scalar_select %p47, %s48, %s49
      %p53 = pneg %p47
      %p54 = scmp.eq.s32.totalorder %s24, 7
      %p55 = por %p53, %p54
      %p56 = scmp.ne.s32.totalorder %s48, %s51
      %p57 = scmp.eq.s32.totalorder %s24, 0
      %p58 = por %p56, %p57
      %p59 = scmp.ne.s32.totalorder %s48, %s51
      %p60 = scmp.eq.s32.totalorder %s29, 7
      %p61 = por %p59, %p60
      %p62 = scmp.ne.s32.totalorder %s51, %s52
      %p63 = scmp.eq.s32.totalorder %s29, 0
      %p64 = por %p62, %p63
      %p65 = scmp.ne.s32.totalorder %s51, %s52
      %p66 = scmp.eq.s32.totalorder %s30, 7
      %p67 = por %p65, %p66
      %p69 = scmp.ne.s32.totalorder %s52, %s68
      %p70 = scmp.eq.s32.totalorder %s30, 0
      %p71 = por %p69, %p70
      %s72 = sadd.s32 %s31, 2
      %s73 = sadd.s32 %s43, 2
      %s74 = ssub.s32 %s72, %s73
      %s75 = ssub.s32 %s32, %s39
      %s76 = sor.u32 %s74, %s75
      %p77 = scmp.eq.s32.totalorder %s76, 0
      %s79 = sadd.s32 %s78, 1
      %s80 = scalar_select %p77, %s78, %s79
      %p83 = pneg %p77
      %p84 = scmp.eq.s32.totalorder %s24, 7
      %p85 = por %p83, %p84
      %p86 = scmp.ne.s32.totalorder %s78, %s81
      %p87 = scmp.eq.s32.totalorder %s24, 0
      %p88 = por %p86, %p87
      %p89 = scmp.ne.s32.totalorder %s78, %s81
      %p90 = scmp.eq.s32.totalorder %s29, 7
      %p91 = por %p89, %p90
      %p92 = scmp.ne.s32.totalorder %s81, %s82
      %p93 = scmp.eq.s32.totalorder %s29, 0
      %p94 = por %p92, %p93
      %p95 = scmp.ne.s32.totalorder %s81, %s82
      %p96 = scmp.eq.s32.totalorder %s30, 7
      %p97 = por %p95, %p96
      %p99 = scmp.ne.s32.totalorder %s82, %s98
      %p100 = scmp.eq.s32.totalorder %s30, 0
      %p101 = por %p99, %p100
      %s102 = ssub.s32 %s32, %s39
      %p103 = scmp.eq.s32.totalorder %s102, 0
      %s105 = sadd.s32 %s104, 1
      %s106 = scalar_select %p103, %s104, %s105
      %p109 = pneg %p103
      %p110 = scmp.eq.s32.totalorder %s24, 7
      %p111 = por %p109, %p110
      %p112 = scmp.ne.s32.totalorder %s104, %s107
      %p113 = scmp.eq.s32.totalorder %s24, 0
      %p114 = por %p112, %p113
      %p115 = scmp.ne.s32.totalorder %s104, %s107
      %p116 = scmp.eq.s32.totalorder %s29, 7
      %p117 = por %p115, %p116
      %p118 = scmp.ne.s32.totalorder %s107, %s108
      %p119 = scmp.eq.s32.totalorder %s29, 0
      %p120 = por %p118, %p119
      %p121 = scmp.ne.s32.totalorder %s107, %s108
      %p122 = scmp.eq.s32.totalorder %s30, 7
      %p123 = por %p121, %p122
      %p125 = scmp.ne.s32.totalorder %s108, %s124
      %p126 = scmp.eq.s32.totalorder %s30, 0
      %p127 = por %p125, %p126
      %s129 = sadd.s32 %s128, 1
      %p132 = scmp.eq.s32.totalorder %s24, 7
      %p133 = scmp.ne.s32.totalorder %s128, %s130
      %p134 = scmp.eq.s32.totalorder %s24, 0
      %p135 = por %p133, %p134
      %p136 = scmp.ne.s32.totalorder %s128, %s130
      %p137 = scmp.eq.s32.totalorder %s29, 7
      %p138 = por %p136, %p137
      %p139 = scmp.ne.s32.totalorder %s130, %s131
      %p140 = scmp.eq.s32.totalorder %s29, 0
      %p141 = por %p139, %p140
      %p142 = scmp.ne.s32.totalorder %s130, %s131
      %p143 = scmp.eq.s32.totalorder %s30, 7
      %p144 = por %p142, %p143
      %p146 = scmp.ne.s32.totalorder %s131, %s145
      %p147 = scmp.eq.s32.totalorder %s30, 0
      %p148 = por %p146, %p147
      %s150 = sadd.s32 %s149, 1
      %p153 = scmp.eq.s32.totalorder %s24, 7
      %p154 = scmp.ne.s32.totalorder %s149, %s151
      %p155 = scmp.eq.s32.totalorder %s24, 0
      %p156 = por %p154, %p155
      %p157 = scmp.ne.s32.totalorder %s149, %s151
      %p158 = scmp.eq.s32.totalorder %s29, 7
      %p159 = por %p157, %p158
      %p160 = scmp.ne.s32.totalorder %s151, %s152
      %p161 = scmp.eq.s32.totalorder %s29, 0
      %p162 = por %p160, %p161
      %p163 = scmp.ne.s32.totalorder %s151, %s152
      %p164 = scmp.eq.s32.totalorder %s30, 7
      %p165 = por %p163, %p164
      %p167 = scmp.ne.s32.totalorder %s152, %s166
      %p168 = scmp.eq.s32.totalorder %s30, 0
      %p169 = por %p167, %p168
      %s171 = sadd.s32 %s170, 1
      %p174 = scmp.eq.s32.totalorder %s24, 7
      %p175 = scmp.ne.s32.totalorder %s170, %s172
      %p176 = scmp.eq.s32.totalorder %s24, 0
      %p177 = por %p175, %p176
      %p178 = scmp.ne.s32.totalorder %s170, %s172
      %p179 = scmp.eq.s32.totalorder %s29, 7
      %p180 = por %p178, %p179
      %p181 = scmp.ne.s32.totalorder %s172, %s173
      %p182 = scmp.eq.s32.totalorder %s29, 0
      %p183 = por %p181, %p182
      %p184 = scmp.ne.s32.totalorder %s172, %s173
      %p185 = scmp.eq.s32.totalorder %s30, 7
      %p186 = por %p184, %p185
      %p188 = scmp.ne.s32.totalorder %s173, %s187
      %p189 = scmp.eq.s32.totalorder %s30, 0
      %p190 = por %p188, %p189
      %s192 = sadd.s32 %s191, 1
      %p195 = scmp.eq.s32.totalorder %s24, 7
      %p196 = scmp.ne.s32.totalorder %s191, %s193
      %p197 = scmp.eq.s32.totalorder %s24, 0
      %p198 = por %p196, %p197
      %p199 = scmp.ne.s32.totalorder %s191, %s193
      %p200 = scmp.eq.s32.totalorder %s29, 7
      %p201 = por %p199, %p200
      %p202 = scmp.ne.s32.totalorder %s193, %s194
      %p203 = scmp.eq.s32.totalorder %s29, 0
      %p204 = por %p202, %p203
      %p205 = scmp.ne.s32.totalorder %s193, %s194
      %p206 = scmp.eq.s32.totalorder %s30, 7
      %p207 = por %p205, %p206
      %p209 = scmp.ne.s32.totalorder %s194, %s208
      %p210 = scmp.eq.s32.totalorder %s30, 0
      %p211 = por %p209, %p210
      %s213 = sadd.s32 %s212, 1
      %p216 = scmp.eq.s32.totalorder %s24, 7
      %p217 = scmp.ne.s32.totalorder %s212, %s214
      %p218 = scmp.eq.s32.totalorder %s24, 0
      %p219 = por %p217, %p218
      %p220 = scmp.ne.s32.totalorder %s212, %s214
      %p221 = scmp.eq.s32.totalorder %s29, 7
      %p222 = por %p220, %p221
      %p223 = scmp.ne.s32.totalorder %s214, %s215
      %p224 = scmp.eq.s32.totalorder %s29, 0
      %p225 = por %p223, %p224
      %p226 = scmp.ne.s32.totalorder %s214, %s215
      %p227 = scmp.eq.s32.totalorder %s30, 7
      %p228 = por %p226, %p227
      %p230 = scmp.ne.s32.totalorder %s215, %s229
      %p231 = scmp.eq.s32.totalorder %s30, 0
      %p232 = por %p230, %p231
      %s234 = sadd.s32 %s233, 1
      %p237 = scmp.eq.s32.totalorder %s24, 7
      %p238 = scmp.ne.s32.totalorder %s233, %s235
      %p239 = scmp.eq.s32.totalorder %s24, 0
      %p240 = por %p238, %p239
      %p241 = scmp.ne.s32.totalorder %s233, %s235
      %p242 = scmp.eq.s32.totalorder %s29, 7
      %p243 = por %p241, %p242
      %p244 = scmp.ne.s32.totalorder %s235, %s236
      %p245 = scmp.eq.s32.totalorder %s29, 0
      %p246 = por %p244, %p245
      %p247 = scmp.ne.s32.totalorder %s235, %s236
      %p248 = scmp.eq.s32.totalorder %s30, 7
      %p249 = por %p247, %p248
      %p251 = scmp.ne.s32.totalorder %s236, %s250
      %p252 = scmp.eq.s32.totalorder %s30, 0
      %p253 = por %p251, %p252
      %s254 = ssub.s32 %s31, %s43
      %p255 = scmp.eq.s32.totalorder %s254, 0
      %s257 = sadd.s32 %s256, 1
      %s258 = scalar_select %p255, %s256, %s257
      %p261 = pneg %p255
      %p262 = scmp.eq.s32.totalorder %s24, 7
      %p263 = por %p261, %p262
      %p264 = scmp.ne.s32.totalorder %s256, %s259
      %p265 = scmp.eq.s32.totalorder %s24, 0
      %p266 = por %p264, %p265
      %p267 = scmp.ne.s32.totalorder %s256, %s259
      %p268 = scmp.eq.s32.totalorder %s29, 7
      %p269 = por %p267, %p268
      %p270 = scmp.ne.s32.totalorder %s259, %s260
      %p271 = scmp.eq.s32.totalorder %s29, 0
      %p272 = por %p270, %p271
      %p273 = scmp.ne.s32.totalorder %s259, %s260
      %p274 = scmp.eq.s32.totalorder %s30, 7
      %p275 = por %p273, %p274
      %p277 = scmp.ne.s32.totalorder %s260, %s276
      %p278 = scmp.eq.s32.totalorder %s30, 0
      %p279 = por %p277, %p278
      %p280 = scmp.le.s32.totalorder 1, %s24
      %p281 = scmp.lt.s32.totalorder %s24, 9
      %p282 = pnand %p280, %p281
      %p283 = pneg %p282
      // Predicated region
      $region9: #{tpu_custom_call.1} parent=5 // pred_check
        _
      $region10: #{tpu_custom_call.1} parent=5 // pred_check_branch
        %285 = sbr.rel (%p282) target = $region12
      $region11: #{tpu_custom_call.1} parent=5 // pred_region
        %s286 = ssub.s32 %s24, 1
        // Predicated region
        $region13: #{tpu_custom_call.1} parent=11 // pred_check
          %p287 = pneg %p141
        $region14: #{tpu_custom_call.1} parent=11 // pred_check_branch
          %289 = sbr.rel (%p287) target = $region16
        $region15: #{tpu_custom_call.1} parent=11 // pred_region
          _
        $region16: #{tpu_custom_call.1} parent=11 // pred_fallthru
          _
        // Predicated region
        $region17: #{tpu_custom_call.1} parent=11 // pred_check
          %p290 = pneg %p162
        $region18: #{tpu_custom_call.1} parent=11 // pred_check_branch
          %292 = sbr.rel (%p290) target = $region20
        $region19: #{tpu_custom_call.1} parent=11 // pred_region
          _
        $region20: #{tpu_custom_call.1} parent=11 // pred_fallthru
          _
        // Predicated region
        $region21: #{tpu_custom_call.1} parent=11 // pred_check
          %p293 = pneg %p183
        $region22: #{tpu_custom_call.1} parent=11 // pred_check_branch
          %295 = sbr.rel (%p293) target = $region24
        $region23: #{tpu_custom_call.1} parent=11 // pred_region
          _
        $region24: #{tpu_custom_call.1} parent=11 // pred_fallthru
          _
        // Predicated region
        $region25: #{tpu_custom_call.1} parent=11 // pred_check
          %p296 = pneg %p204
        $region26: #{tpu_custom_call.1} parent=11 // pred_check_branch
          %298 = sbr.rel (%p296) target = $region28
        $region27: #{tpu_custom_call.1} parent=11 // pred_region
          _
        $region28: #{tpu_custom_call.1} parent=11 // pred_fallthru
          _
        // Predicated region
        $region29: #{tpu_custom_call.1} parent=11 // pred_check
          %p299 = pneg %p225
        $region30: #{tpu_custom_call.1} parent=11 // pred_check_branch
          %301 = sbr.rel (%p299) target = $region32
        $region31: #{tpu_custom_call.1} parent=11 // pred_region
          _
        $region32: #{tpu_custom_call.1} parent=11 // pred_fallthru
          _
        // Predicated region
        $region33: #{tpu_custom_call.1} parent=11 // pred_check
          %p302 = pneg %p246
        $region34: #{tpu_custom_call.1} parent=11 // pred_check_branch
          %304 = sbr.rel (%p302) target = $region36
        $region35: #{tpu_custom_call.1} parent=11 // pred_region
          _
        $region36: #{tpu_custom_call.1} parent=11 // pred_fallthru
          _
      $region12: #{tpu_custom_call.1} parent=5 // pred_fallthru
        _
      %p305 = scmp.lt.s32.totalorder %s24, 8
      // Predicated region
      $region37: #{tpu_custom_call.1} parent=5 // pred_check
        %p306 = pneg %p305
      $region38: #{tpu_custom_call.1} parent=5 // pred_check_branch
        %308 = sbr.rel (%p306) target = $region40
      $region39: #{tpu_custom_call.1} parent=5 // pred_region
        // Predicated region
        $region41: #{tpu_custom_call.1} parent=39 // pred_check
          %p309 = pneg %p58
        $region42: #{tpu_custom_call.1} parent=39 // pred_check_branch
          %311 = sbr.rel (%p309) target = $region44
        $region43: #{tpu_custom_call.1} parent=39 // pred_region
          %s312 = sand.u32 %s48, 1
          %s313 = scalar_lea.sflag [#allocation5], %s312
          %s314 = sand.u32 %s48, 1
          %s315 = smul.addr %s314, 64
          %s316 = scalar_lea.vmem [#allocation4], %s315
          %s317 = smul.u32 16, %s31
          %s319 = ssub.s32 1024, 1024
          %320 = vsyncadd %s313, %s319
          %s321 = smul.addr %s317, 4
          %s322 = sadd.s32 %s32, %s321
          %s323 = smul.addr %s322, 64
          %s324 = scalar_lea.hbm %s0, %s323
          %s325 = sshll.u32 %s316, 4
          %s326 = int_to_ptr.vmem [resolvable:$true] %s325
          %331 = dma.hbm_to_vmem [thread:$0]  %s324, 1024, %s326, %s313, 256, 64, 4
        $region44: #{tpu_custom_call.1} parent=39 // pred_fallthru
          _
        // Predicated region
        $region45: #{tpu_custom_call.1} parent=39 // pred_check
          %p332 = pneg %p88
        $region46: #{tpu_custom_call.1} parent=39 // pred_check_branch
          %334 = sbr.rel (%p332) target = $region48
        $region47: #{tpu_custom_call.1} parent=39 // pred_region
          %s335 = sand.u32 %s78, 1
          %s336 = scalar_lea.sflag [#allocation8], %s335
          %s337 = sand.u32 %s78, 1
          %s338 = smul.addr %s337, 64
          %s339 = scalar_lea.vmem [#allocation7], %s338
          %s340 = sadd.s32 %s31, 2
          %s341 = smul.u32 16, %s340
          %s343 = ssub.s32 1024, 1024
          %344 = vsyncadd %s336, %s343
          %s345 = smul.addr %s341, 4
          %s346 = sadd.s32 %s32, %s345
          %s347 = smul.addr %s346, 64
          %s348 = scalar_lea.hbm %s1, %s347
          %s349 = sshll.u32 %s339, 4
          %s350 = int_to_ptr.vmem [resolvable:$true] %s349
          %355 = dma.hbm_to_vmem [thread:$0]  %s348, 1024, %s350, %s336, 256, 64, 4
        $region48: #{tpu_custom_call.1} parent=39 // pred_fallthru
          _
        // Predicated region
        $region49: #{tpu_custom_call.1} parent=39 // pred_check
          %p356 = pneg %p114
        $region50: #{tpu_custom_call.1} parent=39 // pred_check_branch
          %358 = sbr.rel (%p356) target = $region52
        $region51: #{tpu_custom_call.1} parent=39 // pred_region
          %s359 = smul.u32 16, %s32
          %p360 = scmp.lt.s32.totalorder %s359, 63
          %s361 = scalar_select %p360, %s359, 63
          %s362 = smul.addr %s361, 4
          %s363 = scalar_lea.vmem %s2, %s362
          %s364 = smul.u32 16, %s32
        $region52: #{tpu_custom_call.1} parent=39 // pred_fallthru
          _
      $region40: #{tpu_custom_call.1} parent=5 // pred_fallthru
        _
      %p365 = scmp.le.s32.totalorder 1, %s24
      %p366 = scmp.lt.s32.totalorder %s24, 9
      %p367 = pnand %p365, %p366
      %p368 = pneg %p367
      // Predicated region
      $region53: #{tpu_custom_call.1} parent=5 // pred_check
        _
      $region54: #{tpu_custom_call.1} parent=5 // pred_check_branch
        %370 = sbr.rel (%p367) target = $region56
      $region55: #{tpu_custom_call.1} parent=5 // pred_region
        %s371 = ssub.s32 %s24, 1
        %s372 = sand.u32 %s51, 1
        %s373 = scalar_lea.sflag [#allocation5], %s372
        %s374 = sand.u32 %s51, 1
        %s375 = smul.addr %s374, 64
        %s376 = scalar_lea.vmem [#allocation4], %s375
        // Predicated region
        $region57: #{tpu_custom_call.1} parent=55 // pred_check
          %p377 = pneg %p64
        $region58: #{tpu_custom_call.1} parent=55 // pred_check_branch
          %379 = sbr.rel (%p377) target = $region60
        $region59: #{tpu_custom_call.1} parent=55 // pred_region
          %380 = dma.done %s373, 1024
        $region60: #{tpu_custom_call.1} parent=55 // pred_fallthru
          _
        %s381 = sand.u32 %s81, 1
        %s382 = scalar_lea.sflag [#allocation8], %s381
        %s383 = sand.u32 %s81, 1
        %s384 = smul.addr %s383, 64
        %s385 = scalar_lea.vmem [#allocation7], %s384
        // Predicated region
        $region61: #{tpu_custom_call.1} parent=55 // pred_check
          %p386 = pneg %p94
        $region62: #{tpu_custom_call.1} parent=55 // pred_check_branch
          %388 = sbr.rel (%p386) target = $region64
        $region63: #{tpu_custom_call.1} parent=55 // pred_region
          %389 = dma.done %s382, 1024
        $region64: #{tpu_custom_call.1} parent=55 // pred_fallthru
          _
        %s390 = sand.u32 %s51, 1
        %s391 = scalar_lea.sflag [#allocation5], %s390
        %s392 = sand.u32 %s51, 1
        %s393 = smul.addr %s392, 64
        %s394 = scalar_lea.vmem [#allocation4], %s393
        %p395 = pneg %p64
        %p396 = pneg %p61
        %s397 = sand.u32 %s81, 1
        %s398 = scalar_lea.sflag [#allocation8], %s397
        %s399 = sand.u32 %s81, 1
        %s400 = smul.addr %s399, 64
        %s401 = scalar_lea.vmem [#allocation7], %s400
        %p402 = pneg %p94
        %p403 = pneg %p91
        %s404 = smul.u32 16, %s34
        %p405 = scmp.lt.s32.totalorder %s404, 63
        %s406 = scalar_select %p405, %s404, 63
        %s407 = smul.addr %s406, 4
        %s408 = scalar_lea.vmem %s2, %s407
        %p409 = pneg %p120
        %p410 = pneg %p117
        %p411 = pneg %p141
        %p412 = pneg %p138
        %p413 = pneg %p162
        %p414 = pneg %p159
        %p415 = pneg %p183
        %p416 = pneg %p180
        %p417 = pneg %p204
        %p418 = pneg %p201
        %p419 = pneg %p225
        %p420 = pneg %p222
        %p421 = pneg %p246
        %p422 = pneg %p243
        %p423 = pneg %p272
        %p424 = pneg %p269
        %s425 = sand.u32 %s259, 1
        %s426 = scalar_lea.sflag [#allocation6], %s425
        %s427 = sand.u32 %s259, 1
        %s428 = smul.addr %s427, 128
        %s429 = scalar_lea.vmem [#allocation9], %s428
        %s430 = smul.u32 16, %s33
        %s431 = sadd.s32 %s33, 2
        %s432 = smul.u32 16, %s431
        %s433 = smul.u32 16, %s34
        %p434 = scmp.lt.s32.totalorder %s433, 63
        %s435 = scalar_select %p434, %s433, 63
        %s436 = smul.addr %s435, 4
        %s437 = scalar_lea.vmem %s2, %s436
        %s438 = smul.u32 16, %s34
        %s439 = smul.u32 16, %s33
        %p441 = scmp.eq.s32.totalorder %s34, 0
        // Predicated region
        $region65: #{tpu_custom_call.1} parent=55 // pred_check
          %p442 = pneg %p441
        $region66: #{tpu_custom_call.1} parent=55 // pred_check_branch
          %444 = sbr.rel (%p442) target = $region68
        $region67: #{tpu_custom_call.1} parent=55 // pred_region
          %vm445 = vcmask 64512
          %446 = vst.msk [vmem:[#allocation2] sm:$0xff] %vm445, 0.0
          %447 = vst.msk [vmem:[#allocation2 + $0x8] sm:$0xff] %vm445, 0.0
          %448 = vst.msk [vmem:[#allocation2 + $0x10] sm:$0xff] %vm445, 0.0
          %449 = vst.msk [vmem:[#allocation2 + $0x18] sm:$0xff] %vm445, 0.0
          %450 = vst.msk [vmem:[#allocation2 + $0x20] sm:$0xff] %vm445, 0.0
          %451 = vst.msk [vmem:[#allocation2 + $0x28] sm:$0xff] %vm445, 0.0
          %452 = vst.msk [vmem:[#allocation2 + $0x30] sm:$0xff] %vm445, 0.0
          %453 = vst.msk [vmem:[#allocation2 + $0x38] sm:$0xff] %vm445, 0.0
          %454 = vst.msk [vmem:[#allocation2 + $0x40] sm:$0xff] %vm445, 0.0
          %455 = vst.msk [vmem:[#allocation2 + $0x48] sm:$0xff] %vm445, 0.0
          %456 = vst.msk [vmem:[#allocation2 + $0x50] sm:$0xff] %vm445, 0.0
          %457 = vst.msk [vmem:[#allocation2 + $0x58] sm:$0xff] %vm445, 0.0
          %458 = vst.msk [vmem:[#allocation2 + $0x60] sm:$0xff] %vm445, 0.0
          %459 = vst.msk [vmem:[#allocation2 + $0x68] sm:$0xff] %vm445, 0.0
          %460 = vst.msk [vmem:[#allocation2 + $0x70] sm:$0xff] %vm445, 0.0
          %461 = vst.msk [vmem:[#allocation2 + $0x78] sm:$0xff] %vm445, 0.0
          %462 = vst.msk [vmem:[#allocation3] sm:$0xff] %vm445, 0.0
          %463 = vst.msk [vmem:[#allocation3 + $0x8] sm:$0xff] %vm445, 0.0
          %464 = vst.msk [vmem:[#allocation3 + $0x10] sm:$0xff] %vm445, 0.0
          %465 = vst.msk [vmem:[#allocation3 + $0x18] sm:$0xff] %vm445, 0.0
          %466 = vst.msk [vmem:[#allocation3 + $0x20] sm:$0xff] %vm445, 0.0
          %467 = vst.msk [vmem:[#allocation3 + $0x28] sm:$0xff] %vm445, 0.0
          %468 = vst.msk [vmem:[#allocation3 + $0x30] sm:$0xff] %vm445, 0.0
          %469 = vst.msk [vmem:[#allocation3 + $0x38] sm:$0xff] %vm445, 0.0
          %470 = vst.msk [vmem:[#allocation3 + $0x40] sm:$0xff] %vm445, 0.0
          %471 = vst.msk [vmem:[#allocation3 + $0x48] sm:$0xff] %vm445, 0.0
          %472 = vst.msk [vmem:[#allocation3 + $0x50] sm:$0xff] %vm445, 0.0
          %473 = vst.msk [vmem:[#allocation3 + $0x58] sm:$0xff] %vm445, 0.0
          %474 = vst.msk [vmem:[#allocation3 + $0x60] sm:$0xff] %vm445, 0.0
          %475 = vst.msk [vmem:[#allocation3 + $0x68] sm:$0xff] %vm445, 0.0
          %476 = vst.msk [vmem:[#allocation3 + $0x70] sm:$0xff] %vm445, 0.0
          %477 = vst.msk [vmem:[#allocation3 + $0x78] sm:$0xff] %vm445, 0.0
        $region68: #{tpu_custom_call.1} parent=55 // pred_fallthru
          _
        %v478 = vld [vmem:[%s437] sm:$0xf]
        %v479 = vld [vmem:[%s437 + $0x4] sm:$0xf]
        %v480 = vld [vmem:[%s437 + $0x8] sm:$0xf]
        %v481 = vld [vmem:[%s437 + $0xc] sm:$0xf]
        %v482 = vld [vmem:[%s437 + $0x10] sm:$0xf]
        %v483 = vld [vmem:[%s437 + $0x14] sm:$0xf]
        %v484 = vld [vmem:[%s437 + $0x18] sm:$0xf]
        %v485 = vld [vmem:[%s437 + $0x1c] sm:$0xf]
        %v486 = vld [vmem:[%s437 + $0x20] sm:$0xf]
        %v487 = vld [vmem:[%s437 + $0x24] sm:$0xf]
        %v488 = vld [vmem:[%s437 + $0x28] sm:$0xf]
        %v489 = vld [vmem:[%s437 + $0x2c] sm:$0xf]
        %v490 = vld [vmem:[%s437 + $0x30] sm:$0xf]
        %v491 = vld [vmem:[%s437 + $0x34] sm:$0xf]
        %v492 = vld [vmem:[%s437 + $0x38] sm:$0xf]
        %v493 = vld [vmem:[%s437 + $0x3c] sm:$0xf]
        %v494 = vld [vmem:[#allocation2] sm:$0xff]
        %v495 = vld [vmem:[#allocation2 + $0x8] sm:$0xff]
        %v496 = vld [vmem:[#allocation2 + $0x10] sm:$0xff]
        %v497 = vld [vmem:[#allocation2 + $0x18] sm:$0xff]
        %v498 = vld [vmem:[#allocation2 + $0x20] sm:$0xff]
        %v499 = vld [vmem:[#allocation2 + $0x28] sm:$0xff]
        %v500 = vld [vmem:[#allocation2 + $0x30] sm:$0xff]
        %v501 = vld [vmem:[#allocation2 + $0x38] sm:$0xff]
        %v502 = vld [vmem:[#allocation2 + $0x40] sm:$0xff]
        %v503 = vld [vmem:[#allocation2 + $0x48] sm:$0xff]
        %v504 = vld [vmem:[#allocation2 + $0x50] sm:$0xff]
        %v505 = vld [vmem:[#allocation2 + $0x58] sm:$0xff]
        %v506 = vld [vmem:[#allocation2 + $0x60] sm:$0xff]
        %v507 = vld [vmem:[#allocation2 + $0x68] sm:$0xff]
        %v508 = vld [vmem:[#allocation2 + $0x70] sm:$0xff]
        %v509 = vld [vmem:[#allocation2 + $0x78] sm:$0xff]
        %v510 = vld [vmem:[%s376] sm:$0xf]
        %v511 = vld [vmem:[%s376 + $0x4] sm:$0xf]
        %v512 = vld [vmem:[%s376 + $0x8] sm:$0xf]
        %v513 = vld [vmem:[%s376 + $0xc] sm:$0xf]
        %v514 = vld [vmem:[%s376 + $0x10] sm:$0xf]
        %v515 = vld [vmem:[%s376 + $0x14] sm:$0xf]
        %v516 = vld [vmem:[%s376 + $0x18] sm:$0xf]
        %v517 = vld [vmem:[%s376 + $0x1c] sm:$0xf]
        %v518 = vld [vmem:[%s376 + $0x20] sm:$0xf]
        %v519 = vld [vmem:[%s376 + $0x24] sm:$0xf]
        %v520 = vld [vmem:[%s376 + $0x28] sm:$0xf]
        %v521 = vld [vmem:[%s376 + $0x2c] sm:$0xf]
        %v522 = vld [vmem:[%s376 + $0x30] sm:$0xf]
        %v523 = vld [vmem:[%s376 + $0x34] sm:$0xf]
        %v524 = vld [vmem:[%s376 + $0x38] sm:$0xf]
        %v525 = vld [vmem:[%s376 + $0x3c] sm:$0xf]
        %v542 = vunpack.c.l.b16 %v510
        %v543 = vunpack.c.l.b16 %v511
        %v544 = vunpack.c.l.b16 %v512
        %v545 = vunpack.c.l.b16 %v513
        %v546 = vunpack.c.l.b16 %v514
        %v547 = vunpack.c.l.b16 %v515
        %v548 = vunpack.c.l.b16 %v516
        %v549 = vunpack.c.l.b16 %v517
        %v550 = vunpack.c.l.b16 %v518
        %v551 = vunpack.c.l.b16 %v519
        %v552 = vunpack.c.l.b16 %v520
        %v553 = vunpack.c.l.b16 %v521
        %v554 = vunpack.c.l.b16 %v522
        %v555 = vunpack.c.l.b16 %v523
        %v556 = vunpack.c.l.b16 %v524
        %v557 = vunpack.c.l.b16 %v525
        %v558 = vpack.c.b16 %v543, %v542
        %v559 = vpack.c.b16 %v545, %v544
        %v560 = vpack.c.b16 %v547, %v546
        %v561 = vpack.c.b16 %v549, %v548
        %v562 = vpack.c.b16 %v551, %v550
        %v563 = vpack.c.b16 %v553, %v552
        %v564 = vpack.c.b16 %v555, %v554
        %v565 = vpack.c.b16 %v557, %v556
        %v590 = vunpack.c.l.b16 %v478
        %v591 = vunpack.c.l.b16 %v479
        %v592 = vunpack.c.l.b16 %v480
        %v593 = vunpack.c.l.b16 %v481
        %v594 = vunpack.c.l.b16 %v482
        %v595 = vunpack.c.l.b16 %v483
        %v596 = vunpack.c.l.b16 %v484
        %v597 = vunpack.c.l.b16 %v485
        %v598 = vunpack.c.l.b16 %v486
        %v599 = vunpack.c.l.b16 %v487
        %v600 = vunpack.c.l.b16 %v488
        %v601 = vunpack.c.l.b16 %v489
        %v602 = vunpack.c.l.b16 %v490
        %v603 = vunpack.c.l.b16 %v491
        %v604 = vunpack.c.l.b16 %v492
        %v605 = vunpack.c.l.b16 %v493
        %v606 = vpack.c.b16 %v591, %v590
        %v607 = vpack.c.b16 %v593, %v592
        %v608 = vpack.c.b16 %v595, %v594
        %v609 = vpack.c.b16 %v597, %v596
        %v610 = vpack.c.b16 %v599, %v598
        %v611 = vpack.c.b16 %v601, %v600
        %v612 = vpack.c.b16 %v603, %v602
        %v613 = vpack.c.b16 %v605, %v604
        %622 = vmatprep.subr.bf16.mxu0 0
        %623 = vmatpush1.bf16.msra.mxu0 %v613
        %624 = vmatprep.subr.bf16.mxu0 0
        %625 = vmatpush1.bf16.msra.mxu0 %v612
        %626 = vmatprep.subr.bf16.mxu0 0
        %627 = vmatpush1.bf16.msra.mxu0 %v611
        %628 = vmatprep.subr.bf16.mxu0 0
        %629 = vmatpush1.bf16.msra.mxu0 %v610
        %630 = vmatprep.subr.bf16.mxu0 0
        %631 = vmatpush1.bf16.msra.mxu0 %v609
        %632 = vmatprep.subr.bf16.mxu0 0
        %633 = vmatpush1.bf16.msra.mxu0 %v608
        %634 = vmatprep.subr.bf16.mxu0 0
        %635 = vmatpush1.bf16.msra.mxu0 %v607
        %636 = vmatprep.subr.bf16.mxu0 0
        %637 = vmatpush1.bf16.msra.mxu0 %v606
        %638 = vmatprep.subr.bf16.mxu0 0
        %639 = vmatpush2.bf16.msra.mxu0 0
        %640 = vmatprep.subr.bf16.mxu0 0
        %641 = vmatpush2.bf16.msra.mxu0 0
        %642 = vmatprep.subr.bf16.mxu0 0
        %643 = vmatpush2.bf16.msra.mxu0 0
        %644 = vmatprep.subr.bf16.mxu0 0
        %645 = vmatpush2.bf16.msra.mxu0 0
        %646 = vmatprep.subr.bf16.mxu0 0
        %647 = vmatpush2.bf16.msra.mxu0 0
        %648 = vmatprep.subr.bf16.mxu0 0
        %649 = vmatpush2.bf16.msra.mxu0 0
        %650 = vmatprep.subr.bf16.mxu0 0
        %651 = vmatpush2.bf16.msra.mxu0 0
        %652 = vmatprep.subr.bf16.mxu0 0
        %653 = vmatpush2.bf16.msra.mxu0 0
        %654 = vmatprep.mubr.bf16.mxu0 0
        %655 = vmatmul.mubr.bf16.gmra.mxu0 %v558
        %v656 = vpop.f32.mrf.mxu0
        %v657 = vadd.f32 0.0, %v656
        %v658 = vpop.f32.mrf.mxu0
        %v659 = vpop.f32.mrf.mxu0
        %v660 = vadd.f32 0.0, %v659
        %v661 = vpop.f32.mrf.mxu0
        %662 = vmatprep.mubr.bf16.mxu0 0
        %663 = vmatmul.mubr.bf16.gmra.mxu0 %v559
        %v664 = vpop.f32.mrf.mxu0
        %v665 = vadd.f32 0.0, %v664
        %v666 = vpop.f32.mrf.mxu0
        %v667 = vpop.f32.mrf.mxu0
        %v668 = vadd.f32 0.0, %v667
        %v669 = vpop.f32.mrf.mxu0
        %670 = vmatprep.mubr.bf16.mxu0 0
        %671 = vmatmul.mubr.bf16.gmra.mxu0 %v560
        %v672 = vpop.f32.mrf.mxu0
        %v673 = vadd.f32 0.0, %v672
        %v674 = vpop.f32.mrf.mxu0
        %v675 = vpop.f32.mrf.mxu0
        %v676 = vadd.f32 0.0, %v675
        %v677 = vpop.f32.mrf.mxu0
        %678 = vmatprep.mubr.bf16.mxu0 0
        %679 = vmatmul.mubr.bf16.gmra.mxu0 %v561
        %v680 = vpop.f32.mrf.mxu0
        %v681 = vadd.f32 0.0, %v680
        %v682 = vpop.f32.mrf.mxu0
        %v683 = vpop.f32.mrf.mxu0
        %v684 = vadd.f32 0.0, %v683
        %v685 = vpop.f32.mrf.mxu0
        %686 = vmatprep.mubr.bf16.mxu0 0
        %687 = vmatmul.mubr.bf16.gmra.mxu0 %v562
        %v688 = vpop.f32.mrf.mxu0
        %v689 = vadd.f32 0.0, %v688
        %v690 = vpop.f32.mrf.mxu0
        %v691 = vpop.f32.mrf.mxu0
        %v692 = vadd.f32 0.0, %v691
        %v693 = vpop.f32.mrf.mxu0
        %694 = vmatprep.mubr.bf16.mxu0 0
        %695 = vmatmul.mubr.bf16.gmra.mxu0 %v563
        %v696 = vpop.f32.mrf.mxu0
        %v697 = vadd.f32 0.0, %v696
        %v698 = vpop.f32.mrf.mxu0
        %v699 = vpop.f32.mrf.mxu0
        %v700 = vadd.f32 0.0, %v699
        %v701 = vpop.f32.mrf.mxu0
        %702 = vmatprep.mubr.bf16.mxu0 0
        %703 = vmatmul.mubr.bf16.gmra.mxu0 %v564
        %v704 = vpop.f32.mrf.mxu0
        %v705 = vadd.f32 0.0, %v704
        %v706 = vpop.f32.mrf.mxu0
        %v707 = vpop.f32.mrf.mxu0
        %v708 = vadd.f32 0.0, %v707
        %v709 = vpop.f32.mrf.mxu0
        %710 = vmatprep.mubr.bf16.mxu0 0
        %711 = vmatmul.mubr.bf16.gmra.mxu0 %v565
        %v712 = vpop.f32.mrf.mxu0
        %v713 = vadd.f32 0.0, %v712
        %v714 = vpop.f32.mrf.mxu0
        %v715 = vpop.f32.mrf.mxu0
        %v716 = vadd.f32 0.0, %v715
        %v717 = vpop.f32.mrf.mxu0
        %718 = vdwg.mxu0
        %v719 = vadd.f32 %v494, %v657
        %v720 = vadd.f32 %v495, %v660
        %v721 = vadd.f32 %v496, %v665
        %v722 = vadd.f32 %v497, %v668
        %v723 = vadd.f32 %v498, %v673
        %v724 = vadd.f32 %v499, %v676
        %v725 = vadd.f32 %v500, %v681
        %v726 = vadd.f32 %v501, %v684
        %v727 = vadd.f32 %v502, %v689
        %v728 = vadd.f32 %v503, %v692
        %v729 = vadd.f32 %v504, %v697
        %v730 = vadd.f32 %v505, %v700
        %v731 = vadd.f32 %v506, %v705
        %v732 = vadd.f32 %v507, %v708
        %v733 = vadd.f32 %v508, %v713
        %v734 = vadd.f32 %v509, %v716
        %vm735 = vcmask 64512
        %736 = vst.msk [vmem:[#allocation2] sm:$0xff] %vm735, %v719
        %737 = vst.msk [vmem:[#allocation2 + $0x8] sm:$0xff] %vm735, %v720
        %738 = vst.msk [vmem:[#allocation2 + $0x10] sm:$0xff] %vm735, %v721
        %739 = vst.msk [vmem:[#allocation2 + $0x18] sm:$0xff] %vm735, %v722
        %740 = vst.msk [vmem:[#allocation2 + $0x20] sm:$0xff] %vm735, %v723
        %741 = vst.msk [vmem:[#allocation2 + $0x28] sm:$0xff] %vm735, %v724
        %742 = vst.msk [vmem:[#allocation2 + $0x30] sm:$0xff] %vm735, %v725
        %743 = vst.msk [vmem:[#allocation2 + $0x38] sm:$0xff] %vm735, %v726
        %744 = vst.msk [vmem:[#allocation2 + $0x40] sm:$0xff] %vm735, %v727
        %745 = vst.msk [vmem:[#allocation2 + $0x48] sm:$0xff] %vm735, %v728
        %746 = vst.msk [vmem:[#allocation2 + $0x50] sm:$0xff] %vm735, %v729
        %747 = vst.msk [vmem:[#allocation2 + $0x58] sm:$0xff] %vm735, %v730
        %748 = vst.msk [vmem:[#allocation2 + $0x60] sm:$0xff] %vm735, %v731
        %749 = vst.msk [vmem:[#allocation2 + $0x68] sm:$0xff] %vm735, %v732
        %750 = vst.msk [vmem:[#allocation2 + $0x70] sm:$0xff] %vm735, %v733
        %751 = vst.msk [vmem:[#allocation2 + $0x78] sm:$0xff] %vm735, %v734
        %v752 = vld [vmem:[#allocation3] sm:$0xff]
        %v753 = vld [vmem:[#allocation3 + $0x8] sm:$0xff]
        %v754 = vld [vmem:[#allocation3 + $0x10] sm:$0xff]
        %v755 = vld [vmem:[#allocation3 + $0x18] sm:$0xff]
        %v756 = vld [vmem:[#allocation3 + $0x20] sm:$0xff]
        %v757 = vld [vmem:[#allocation3 + $0x28] sm:$0xff]
        %v758 = vld [vmem:[#allocation3 + $0x30] sm:$0xff]
        %v759 = vld [vmem:[#allocation3 + $0x38] sm:$0xff]
        %v760 = vld [vmem:[#allocation3 + $0x40] sm:$0xff]
        %v761 = vld [vmem:[#allocation3 + $0x48] sm:$0xff]
        %v762 = vld [vmem:[#allocation3 + $0x50] sm:$0xff]
        %v763 = vld [vmem:[#allocation3 + $0x58] sm:$0xff]
        %v764 = vld [vmem:[#allocation3 + $0x60] sm:$0xff]
        %v765 = vld [vmem:[#allocation3 + $0x68] sm:$0xff]
        %v766 = vld [vmem:[#allocation3 + $0x70] sm:$0xff]
        %v767 = vld [vmem:[#allocation3 + $0x78] sm:$0xff]
        %v768 = vld [vmem:[%s385] sm:$0xf]
        %v769 = vld [vmem:[%s385 + $0x4] sm:$0xf]
        %v770 = vld [vmem:[%s385 + $0x8] sm:$0xf]
        %v771 = vld [vmem:[%s385 + $0xc] sm:$0xf]
        %v772 = vld [vmem:[%s385 + $0x10] sm:$0xf]
        %v773 = vld [vmem:[%s385 + $0x14] sm:$0xf]
        %v774 = vld [vmem:[%s385 + $0x18] sm:$0xf]
        %v775 = vld [vmem:[%s385 + $0x1c] sm:$0xf]
        %v776 = vld [vmem:[%s385 + $0x20] sm:$0xf]
        %v777 = vld [vmem:[%s385 + $0x24] sm:$0xf]
        %v778 = vld [vmem:[%s385 + $0x28] sm:$0xf]
        %v779 = vld [vmem:[%s385 + $0x2c] sm:$0xf]
        %v780 = vld [vmem:[%s385 + $0x30] sm:$0xf]
        %v781 = vld [vmem:[%s385 + $0x34] sm:$0xf]
        %v782 = vld [vmem:[%s385 + $0x38] sm:$0xf]
        %v783 = vld [vmem:[%s385 + $0x3c] sm:$0xf]
        %v800 = vunpack.c.l.b16 %v768
        %v801 = vunpack.c.l.b16 %v769
        %v802 = vunpack.c.l.b16 %v770
        %v803 = vunpack.c.l.b16 %v771
        %v804 = vunpack.c.l.b16 %v772
        %v805 = vunpack.c.l.b16 %v773
        %v806 = vunpack.c.l.b16 %v774
        %v807 = vunpack.c.l.b16 %v775
        %v808 = vunpack.c.l.b16 %v776
        %v809 = vunpack.c.l.b16 %v777
        %v810 = vunpack.c.l.b16 %v778
        %v811 = vunpack.c.l.b16 %v779
        %v812 = vunpack.c.l.b16 %v780
        %v813 = vunpack.c.l.b16 %v781
        %v814 = vunpack.c.l.b16 %v782
        %v815 = vunpack.c.l.b16 %v783
        %v816 = vpack.c.b16 %v801, %v800
        %v817 = vpack.c.b16 %v803, %v802
        %v818 = vpack.c.b16 %v805, %v804
        %v819 = vpack.c.b16 %v807, %v806
        %v820 = vpack.c.b16 %v809, %v808
        %v821 = vpack.c.b16 %v811, %v810
        %v822 = vpack.c.b16 %v813, %v812
        %v823 = vpack.c.b16 %v815, %v814
        %832 = vmatprep.subr.bf16.mxu0 0
        %833 = vmatpush1.bf16.msra.mxu0 %v613
        %834 = vmatprep.subr.bf16.mxu0 0
        %835 = vmatpush1.bf16.msra.mxu0 %v612
        %836 = vmatprep.subr.bf16.mxu0 0
        %837 = vmatpush1.bf16.msra.mxu0 %v611
        %838 = vmatprep.subr.bf16.mxu0 0
        %839 = vmatpush1.bf16.msra.mxu0 %v610
        %840 = vmatprep.subr.bf16.mxu0 0
        %841 = vmatpush1.bf16.msra.mxu0 %v609
        %842 = vmatprep.subr.bf16.mxu0 0
        %843 = vmatpush1.bf16.msra.mxu0 %v608
        %844 = vmatprep.subr.bf16.mxu0 0
        %845 = vmatpush1.bf16.msra.mxu0 %v607
        %846 = vmatprep.subr.bf16.mxu0 0
        %847 = vmatpush1.bf16.msra.mxu0 %v606
        %848 = vmatprep.subr.bf16.mxu0 0
        %849 = vmatpush2.bf16.msra.mxu0 0
        %850 = vmatprep.subr.bf16.mxu0 0
        %851 = vmatpush2.bf16.msra.mxu0 0
        %852 = vmatprep.subr.bf16.mxu0 0
        %853 = vmatpush2.bf16.msra.mxu0 0
        %854 = vmatprep.subr.bf16.mxu0 0
        %855 = vmatpush2.bf16.msra.mxu0 0
        %856 = vmatprep.subr.bf16.mxu0 0
        %857 = vmatpush2.bf16.msra.mxu0 0
        %858 = vmatprep.subr.bf16.mxu0 0
        %859 = vmatpush2.bf16.msra.mxu0 0
        %860 = vmatprep.subr.bf16.mxu0 0
        %861 = vmatpush2.bf16.msra.mxu0 0
        %862 = vmatprep.subr.bf16.mxu0 0
        %863 = vmatpush2.bf16.msra.mxu0 0
        %864 = vmatprep.mubr.bf16.mxu0 0
        %865 = vmatmul.mubr.bf16.gmra.mxu0 %v816
        %v866 = vpop.f32.mrf.mxu0
        %v867 = vadd.f32 0.0, %v866
        %v868 = vpop.f32.mrf.mxu0
        %v869 = vpop.f32.mrf.mxu0
        %v870 = vadd.f32 0.0, %v869
        %v871 = vpop.f32.mrf.mxu0
        %872 = vmatprep.mubr.bf16.mxu0 0
        %873 = vmatmul.mubr.bf16.gmra.mxu0 %v817
        %v874 = vpop.f32.mrf.mxu0
        %v875 = vadd.f32 0.0, %v874
        %v876 = vpop.f32.mrf.mxu0
        %v877 = vpop.f32.mrf.mxu0
        %v878 = vadd.f32 0.0, %v877
        %v879 = vpop.f32.mrf.mxu0
        %880 = vmatprep.mubr.bf16.mxu0 0
        %881 = vmatmul.mubr.bf16.gmra.mxu0 %v818
        %v882 = vpop.f32.mrf.mxu0
        %v883 = vadd.f32 0.0, %v882
        %v884 = vpop.f32.mrf.mxu0
        %v885 = vpop.f32.mrf.mxu0
        %v886 = vadd.f32 0.0, %v885
        %v887 = vpop.f32.mrf.mxu0
        %888 = vmatprep.mubr.bf16.mxu0 0
        %889 = vmatmul.mubr.bf16.gmra.mxu0 %v819
        %v890 = vpop.f32.mrf.mxu0
        %v891 = vadd.f32 0.0, %v890
        %v892 = vpop.f32.mrf.mxu0
        %v893 = vpop.f32.mrf.mxu0
        %v894 = vadd.f32 0.0, %v893
        %v895 = vpop.f32.mrf.mxu0
        %896 = vmatprep.mubr.bf16.mxu0 0
        %897 = vmatmul.mubr.bf16.gmra.mxu0 %v820
        %v898 = vpop.f32.mrf.mxu0
        %v899 = vadd.f32 0.0, %v898
        %v900 = vpop.f32.mrf.mxu0
        %v901 = vpop.f32.mrf.mxu0
        %v902 = vadd.f32 0.0, %v901
        %v903 = vpop.f32.mrf.mxu0
        %904 = vmatprep.mubr.bf16.mxu0 0
        %905 = vmatmul.mubr.bf16.gmra.mxu0 %v821
        %v906 = vpop.f32.mrf.mxu0
        %v907 = vadd.f32 0.0, %v906
        %v908 = vpop.f32.mrf.mxu0
        %v909 = vpop.f32.mrf.mxu0
        %v910 = vadd.f32 0.0, %v909
        %v911 = vpop.f32.mrf.mxu0
        %912 = vmatprep.mubr.bf16.mxu0 0
        %913 = vmatmul.mubr.bf16.gmra.mxu0 %v822
        %v914 = vpop.f32.mrf.mxu0
        %v915 = vadd.f32 0.0, %v914
        %v916 = vpop.f32.mrf.mxu0
        %v917 = vpop.f32.mrf.mxu0
        %v918 = vadd.f32 0.0, %v917
        %v919 = vpop.f32.mrf.mxu0
        %920 = vmatprep.mubr.bf16.mxu0 0
        %921 = vmatmul.mubr.bf16.gmra.mxu0 %v823
        %v922 = vpop.f32.mrf.mxu0
        %v923 = vadd.f32 0.0, %v922
        %v924 = vpop.f32.mrf.mxu0
        %v925 = vpop.f32.mrf.mxu0
        %v926 = vadd.f32 0.0, %v925
        %v927 = vpop.f32.mrf.mxu0
        %928 = vdwg.mxu0
        %v929 = vadd.f32 %v752, %v867
        %v930 = vadd.f32 %v753, %v870
        %v931 = vadd.f32 %v754, %v875
        %v932 = vadd.f32 %v755, %v878
        %v933 = vadd.f32 %v756, %v883
        %v934 = vadd.f32 %v757, %v886
        %v935 = vadd.f32 %v758, %v891
        %v936 = vadd.f32 %v759, %v894
        %v937 = vadd.f32 %v760, %v899
        %v938 = vadd.f32 %v761, %v902
        %v939 = vadd.f32 %v762, %v907
        %v940 = vadd.f32 %v763, %v910
        %v941 = vadd.f32 %v764, %v915
        %v942 = vadd.f32 %v765, %v918
        %v943 = vadd.f32 %v766, %v923
        %v944 = vadd.f32 %v767, %v926
        %945 = vst.msk [vmem:[#allocation3] sm:$0xff] %vm735, %v929
        %946 = vst.msk [vmem:[#allocation3 + $0x8] sm:$0xff] %vm735, %v930
        %947 = vst.msk [vmem:[#allocation3 + $0x10] sm:$0xff] %vm735, %v931
        %948 = vst.msk [vmem:[#allocation3 + $0x18] sm:$0xff] %vm735, %v932
        %949 = vst.msk [vmem:[#allocation3 + $0x20] sm:$0xff] %vm735, %v933
        %950 = vst.msk [vmem:[#allocation3 + $0x28] sm:$0xff] %vm735, %v934
        %951 = vst.msk [vmem:[#allocation3 + $0x30] sm:$0xff] %vm735, %v935
        %952 = vst.msk [vmem:[#allocation3 + $0x38] sm:$0xff] %vm735, %v936
        %953 = vst.msk [vmem:[#allocation3 + $0x40] sm:$0xff] %vm735, %v937
        %954 = vst.msk [vmem:[#allocation3 + $0x48] sm:$0xff] %vm735, %v938
        %955 = vst.msk [vmem:[#allocation3 + $0x50] sm:$0xff] %vm735, %v939
        %956 = vst.msk [vmem:[#allocation3 + $0x58] sm:$0xff] %vm735, %v940
        %957 = vst.msk [vmem:[#allocation3 + $0x60] sm:$0xff] %vm735, %v941
        %958 = vst.msk [vmem:[#allocation3 + $0x68] sm:$0xff] %vm735, %v942
        %959 = vst.msk [vmem:[#allocation3 + $0x70] sm:$0xff] %vm735, %v943
        %960 = vst.msk [vmem:[#allocation3 + $0x78] sm:$0xff] %vm735, %v944
        %p961 = scmp.eq.s32.totalorder %s34, 3
        // Predicated region
        $region69: #{tpu_custom_call.1} parent=55 // pred_check
          %p962 = pneg %p961
        $region70: #{tpu_custom_call.1} parent=55 // pred_check_branch
          %964 = sbr.rel (%p962) target = $region72
        $region71: #{tpu_custom_call.1} parent=55 // pred_region
          %v965 = vld [vmem:[#allocation2] sm:$0xff]
          %v966 = vld [vmem:[#allocation2 + $0x8] sm:$0xff]
          %v967 = vld [vmem:[#allocation2 + $0x10] sm:$0xff]
          %v968 = vld [vmem:[#allocation2 + $0x18] sm:$0xff]
          %v969 = vld [vmem:[#allocation2 + $0x20] sm:$0xff]
          %v970 = vld [vmem:[#allocation2 + $0x28] sm:$0xff]
          %v971 = vld [vmem:[#allocation2 + $0x30] sm:$0xff]
          %v972 = vld [vmem:[#allocation2 + $0x38] sm:$0xff]
          %v973 = vld [vmem:[#allocation2 + $0x40] sm:$0xff]
          %v974 = vld [vmem:[#allocation2 + $0x48] sm:$0xff]
          %v975 = vld [vmem:[#allocation2 + $0x50] sm:$0xff]
          %v976 = vld [vmem:[#allocation2 + $0x58] sm:$0xff]
          %v977 = vld [vmem:[#allocation2 + $0x60] sm:$0xff]
          %v978 = vld [vmem:[#allocation2 + $0x68] sm:$0xff]
          %v979 = vld [vmem:[#allocation2 + $0x70] sm:$0xff]
          %v980 = vld [vmem:[#allocation2 + $0x78] sm:$0xff]
          %v981 = vpack.c.bf16 %v966, %v965
          %v982 = vpack.c.bf16 %v968, %v967
          %v983 = vpack.c.bf16 %v970, %v969
          %v984 = vpack.c.bf16 %v972, %v971
          %v985 = vpack.c.bf16 %v974, %v973
          %v986 = vpack.c.bf16 %v976, %v975
          %v987 = vpack.c.bf16 %v978, %v977
          %v988 = vpack.c.bf16 %v980, %v979
          %v989 = vld [vmem:[%s3] sm:$0xf]
          %v990 = vld [vmem:[%s4] sm:$0x1]
          %v992 = vlaneseq
          %v993 = vshrl.u32 %v992, 7
          %v994 = vsub.s32 0, %v993
          %v995 = vrot.slane %v990, %v994
          %v998 = vsel %vm735, %v981, 0
          %v1001 = vsel %vm735, %v982, 0
          %v1004 = vsel %vm735, %v983, 0
          %v1007 = vsel %vm735, %v984, 0
          %v1010 = vsel %vm735, %v985, 0
          %v1013 = vsel %vm735, %v986, 0
          %v1016 = vsel %vm735, %v987, 0
          %v1019 = vsel %vm735, %v988, 0
          %vm1021 = vcmask 1043456
          %v1023 = vsel %vm1021, %v989, 0
          %1025 = vmatprep.subr.bf16.mxu0 0
          %1026 = vmatpush1.bf16.msra.mxu0 0
          %1027 = vmatprep.subr.bf16.mxu0 0
          %1028 = vmatpush1.bf16.msra.mxu0 0
          %1029 = vmatprep.subr.bf16.mxu0 0
          %1030 = vmatpush1.bf16.msra.mxu0 0
          %1031 = vmatprep.subr.bf16.mxu0 0
          %1032 = vmatpush1.bf16.msra.mxu0 0
          %1033 = vmatprep.subr.bf16.mxu0 0
          %1034 = vmatpush1.bf16.msra.mxu0 0
          %1035 = vmatprep.subr.bf16.mxu0 0
          %1036 = vmatpush1.bf16.msra.mxu0 0
          %1037 = vmatprep.subr.bf16.mxu0 0
          %1038 = vmatpush1.bf16.msra.mxu0 0
          %1039 = vmatprep.subr.bf16.mxu0 0
          %1040 = vmatpush1.bf16.msra.mxu0 %v1023
          %1041 = vmatprep.subr.bf16.mxu0 0
          %1042 = vmatpush2.bf16.msra.mxu0 0
          %1043 = vmatprep.subr.bf16.mxu0 0
          %1044 = vmatpush2.bf16.msra.mxu0 0
          %1045 = vmatprep.subr.bf16.mxu0 0
          %1046 = vmatpush2.bf16.msra.mxu0 0
          %1047 = vmatprep.subr.bf16.mxu0 0
          %1048 = vmatpush2.bf16.msra.mxu0 0
          %1049 = vmatprep.subr.bf16.mxu0 0
          %1050 = vmatpush2.bf16.msra.mxu0 0
          %1051 = vmatprep.subr.bf16.mxu0 0
          %1052 = vmatpush2.bf16.msra.mxu0 0
          %1053 = vmatprep.subr.bf16.mxu0 0
          %1054 = vmatpush2.bf16.msra.mxu0 0
          %1055 = vmatprep.subr.bf16.mxu0 0
          %1056 = vmatpush2.bf16.msra.mxu0 0
          %1057 = vmatprep.mubr.bf16.mxu0 0
          %1058 = vmatmul.mubr.bf16.gmra.mxu0 %v998
          %v1059 = vpop.f32.mrf.mxu0
          %v1060 = vadd.f32 %v995, %v1059
          %v1061 = vpop.f32.mrf.mxu0
          %v1062 = vpop.f32.mrf.mxu0
          %v1063 = vadd.f32 %v995, %v1062
          %v1064 = vpop.f32.mrf.mxu0
          %1065 = vmatprep.mubr.bf16.mxu0 0
          %1066 = vmatmul.mubr.bf16.gmra.mxu0 %v1001
          %v1067 = vpop.f32.mrf.mxu0
          %v1068 = vadd.f32 %v995, %v1067
          %v1069 = vpop.f32.mrf.mxu0
          %v1070 = vpop.f32.mrf.mxu0
          %v1071 = vadd.f32 %v995, %v1070
          %v1072 = vpop.f32.mrf.mxu0
          %1073 = vmatprep.mubr.bf16.mxu0 0
          %1074 = vmatmul.mubr.bf16.gmra.mxu0 %v1004
          %v1075 = vpop.f32.mrf.mxu0
          %v1076 = vadd.f32 %v995, %v1075
          %v1077 = vpop.f32.mrf.mxu0
          %v1078 = vpop.f32.mrf.mxu0
          %v1079 = vadd.f32 %v995, %v1078
          %v1080 = vpop.f32.mrf.mxu0
          %1081 = vmatprep.mubr.bf16.mxu0 0
          %1082 = vmatmul.mubr.bf16.gmra.mxu0 %v1007
          %v1083 = vpop.f32.mrf.mxu0
          %v1084 = vadd.f32 %v995, %v1083
          %v1085 = vpop.f32.mrf.mxu0
          %v1086 = vpop.f32.mrf.mxu0
          %v1087 = vadd.f32 %v995, %v1086
          %v1088 = vpop.f32.mrf.mxu0
          %1089 = vmatprep.mubr.bf16.mxu0 0
          %1090 = vmatmul.mubr.bf16.gmra.mxu0 %v1010
          %v1091 = vpop.f32.mrf.mxu0
          %v1092 = vadd.f32 %v995, %v1091
          %v1093 = vpop.f32.mrf.mxu0
          %v1094 = vpop.f32.mrf.mxu0
          %v1095 = vadd.f32 %v995, %v1094
          %v1096 = vpop.f32.mrf.mxu0
          %1097 = vmatprep.mubr.bf16.mxu0 0
          %1098 = vmatmul.mubr.bf16.gmra.mxu0 %v1013
          %v1099 = vpop.f32.mrf.mxu0
          %v1100 = vadd.f32 %v995, %v1099
          %v1101 = vpop.f32.mrf.mxu0
          %v1102 = vpop.f32.mrf.mxu0
          %v1103 = vadd.f32 %v995, %v1102
          %v1104 = vpop.f32.mrf.mxu0
          %1105 = vmatprep.mubr.bf16.mxu0 0
          %1106 = vmatmul.mubr.bf16.gmra.mxu0 %v1016
          %v1107 = vpop.f32.mrf.mxu0
          %v1108 = vadd.f32 %v995, %v1107
          %v1109 = vpop.f32.mrf.mxu0
          %v1110 = vpop.f32.mrf.mxu0
          %v1111 = vadd.f32 %v995, %v1110
          %v1112 = vpop.f32.mrf.mxu0
          %1113 = vmatprep.mubr.bf16.mxu0 0
          %1114 = vmatmul.mubr.bf16.gmra.mxu0 %v1019
          %v1115 = vpop.f32.mrf.mxu0
          %v1116 = vadd.f32 %v995, %v1115
          %v1117 = vpop.f32.mrf.mxu0
          %v1118 = vpop.f32.mrf.mxu0
          %v1119 = vadd.f32 %v995, %v1118
          %v1120 = vpop.f32.mrf.mxu0
          %1121 = vdwg.mxu0
          %vm1122 = vcmp.gt.f32.partialorder %v1060, 0.0
          %vm1123 = vcmp.gt.f32.partialorder %v1063, 0.0
          %vm1124 = vcmp.gt.f32.partialorder %v1068, 0.0
          %vm1125 = vcmp.gt.f32.partialorder %v1071, 0.0
          %vm1126 = vcmp.gt.f32.partialorder %v1076, 0.0
          %vm1127 = vcmp.gt.f32.partialorder %v1079, 0.0
          %vm1128 = vcmp.gt.f32.partialorder %v1084, 0.0
          %vm1129 = vcmp.gt.f32.partialorder %v1087, 0.0
          %vm1130 = vcmp.gt.f32.partialorder %v1092, 0.0
          %vm1131 = vcmp.gt.f32.partialorder %v1095, 0.0
          %vm1132 = vcmp.gt.f32.partialorder %v1100, 0.0
          %vm1133 = vcmp.gt.f32.partialorder %v1103, 0.0
          %vm1134 = vcmp.gt.f32.partialorder %v1108, 0.0
          %vm1135 = vcmp.gt.f32.partialorder %v1111, 0.0
          %vm1136 = vcmp.gt.f32.partialorder %v1116, 0.0
          %vm1137 = vcmp.gt.f32.partialorder %v1119, 0.0
          %v1138 = vld [vmem:[%s5] sm:$0x1]
          %v1140 = vlaneseq
          %v1141 = vshrl.u32 %v1140, 7
          %v1142 = vsub.s32 0, %v1141
          %v1143 = vrot.slane %v1138, %v1142
          %v1145 = vmul.f32 %v1143, %v1060
          %v1146 = vmul.f32 %v1143, %v1063
          %v1147 = vmul.f32 %v1143, %v1068
          %v1148 = vmul.f32 %v1143, %v1071
          %v1149 = vmul.f32 %v1143, %v1076
          %v1150 = vmul.f32 %v1143, %v1079
          %v1151 = vmul.f32 %v1143, %v1084
          %v1152 = vmul.f32 %v1143, %v1087
          %v1153 = vmul.f32 %v1143, %v1092
          %v1154 = vmul.f32 %v1143, %v1095
          %v1155 = vmul.f32 %v1143, %v1100
          %v1156 = vmul.f32 %v1143, %v1103
          %v1157 = vmul.f32 %v1143, %v1108
          %v1158 = vmul.f32 %v1143, %v1111
          %v1159 = vmul.f32 %v1143, %v1116
          %v1160 = vmul.f32 %v1143, %v1119
          %v1161 = vsel %vm1122, %v1060, %v1145
          %v1162 = vsel %vm1123, %v1063, %v1146
          %v1163 = vsel %vm1124, %v1068, %v1147
          %v1164 = vsel %vm1125, %v1071, %v1148
          %v1165 = vsel %vm1126, %v1076, %v1149
          %v1166 = vsel %vm1127, %v1079, %v1150
          %v1167 = vsel %vm1128, %v1084, %v1151
          %v1168 = vsel %vm1129, %v1087, %v1152
          %v1169 = vsel %vm1130, %v1092, %v1153
          %v1170 = vsel %vm1131, %v1095, %v1154
          %v1171 = vsel %vm1132, %v1100, %v1155
          %v1172 = vsel %vm1133, %v1103, %v1156
          %v1173 = vsel %vm1134, %v1108, %v1157
          %v1174 = vsel %vm1135, %v1111, %v1158
          %v1175 = vsel %vm1136, %v1116, %v1159
          %v1176 = vsel %vm1137, %v1119, %v1160
          %v1177 = vld [vmem:[#allocation3] sm:$0xff]
          %v1178 = vld [vmem:[#allocation3 + $0x8] sm:$0xff]
          %v1179 = vld [vmem:[#allocation3 + $0x10] sm:$0xff]
          %v1180 = vld [vmem:[#allocation3 + $0x18] sm:$0xff]
          %v1181 = vld [vmem:[#allocation3 + $0x20] sm:$0xff]
          %v1182 = vld [vmem:[#allocation3 + $0x28] sm:$0xff]
          %v1183 = vld [vmem:[#allocation3 + $0x30] sm:$0xff]
          %v1184 = vld [vmem:[#allocation3 + $0x38] sm:$0xff]
          %v1185 = vld [vmem:[#allocation3 + $0x40] sm:$0xff]
          %v1186 = vld [vmem:[#allocation3 + $0x48] sm:$0xff]
          %v1187 = vld [vmem:[#allocation3 + $0x50] sm:$0xff]
          %v1188 = vld [vmem:[#allocation3 + $0x58] sm:$0xff]
          %v1189 = vld [vmem:[#allocation3 + $0x60] sm:$0xff]
          %v1190 = vld [vmem:[#allocation3 + $0x68] sm:$0xff]
          %v1191 = vld [vmem:[#allocation3 + $0x70] sm:$0xff]
          %v1192 = vld [vmem:[#allocation3 + $0x78] sm:$0xff]
          %v1193 = vpack.c.bf16 %v1178, %v1177
          %v1194 = vpack.c.bf16 %v1180, %v1179
          %v1195 = vpack.c.bf16 %v1182, %v1181
          %v1196 = vpack.c.bf16 %v1184, %v1183
          %v1197 = vpack.c.bf16 %v1186, %v1185
          %v1198 = vpack.c.bf16 %v1188, %v1187
          %v1199 = vpack.c.bf16 %v1190, %v1189
          %v1200 = vpack.c.bf16 %v1192, %v1191
          %v1202 = vsel %vm735, %v1193, 0
          %v1205 = vsel %vm735, %v1194, 0
          %v1208 = vsel %vm735, %v1195, 0
          %v1211 = vsel %vm735, %v1196, 0
          %v1214 = vsel %vm735, %v1197, 0
          %v1217 = vsel %vm735, %v1198, 0
          %v1220 = vsel %vm735, %v1199, 0
          %v1223 = vsel %vm735, %v1200, 0
          %1225 = vmatprep.subr.bf16.mxu0 0
          %1226 = vmatpush1.bf16.msra.mxu0 0
          %1227 = vmatprep.subr.bf16.mxu0 0
          %1228 = vmatpush1.bf16.msra.mxu0 0
          %1229 = vmatprep.subr.bf16.mxu0 0
          %1230 = vmatpush1.bf16.msra.mxu0 0
          %1231 = vmatprep.subr.bf16.mxu0 0
          %1232 = vmatpush1.bf16.msra.mxu0 0
          %1233 = vmatprep.subr.bf16.mxu0 0
          %1234 = vmatpush1.bf16.msra.mxu0 0
          %1235 = vmatprep.subr.bf16.mxu0 0
          %1236 = vmatpush1.bf16.msra.mxu0 0
          %1237 = vmatprep.subr.bf16.mxu0 0
          %1238 = vmatpush1.bf16.msra.mxu0 0
          %1239 = vmatprep.subr.bf16.mxu0 0
          %1240 = vmatpush1.bf16.msra.mxu0 %v1023
          %1241 = vmatprep.subr.bf16.mxu0 0
          %1242 = vmatpush2.bf16.msra.mxu0 0
          %1243 = vmatprep.subr.bf16.mxu0 0
          %1244 = vmatpush2.bf16.msra.mxu0 0
          %1245 = vmatprep.subr.bf16.mxu0 0
          %1246 = vmatpush2.bf16.msra.mxu0 0
          %1247 = vmatprep.subr.bf16.mxu0 0
          %1248 = vmatpush2.bf16.msra.mxu0 0
          %1249 = vmatprep.subr.bf16.mxu0 0
          %1250 = vmatpush2.bf16.msra.mxu0 0
          %1251 = vmatprep.subr.bf16.mxu0 0
          %1252 = vmatpush2.bf16.msra.mxu0 0
          %1253 = vmatprep.subr.bf16.mxu0 0
          %1254 = vmatpush2.bf16.msra.mxu0 0
          %1255 = vmatprep.subr.bf16.mxu0 0
          %1256 = vmatpush2.bf16.msra.mxu0 0
          %1257 = vmatprep.mubr.bf16.mxu0 0
          %1258 = vmatmul.mubr.bf16.gmra.mxu0 %v1202
          %v1259 = vpop.f32.mrf.mxu0
          %v1260 = vadd.f32 %v995, %v1259
          %v1261 = vpop.f32.mrf.mxu0
          %v1262 = vpop.f32.mrf.mxu0
          %v1263 = vadd.f32 %v995, %v1262
          %v1264 = vpop.f32.mrf.mxu0
          %1265 = vmatprep.mubr.bf16.mxu0 0
          %1266 = vmatmul.mubr.bf16.gmra.mxu0 %v1205
          %v1267 = vpop.f32.mrf.mxu0
          %v1268 = vadd.f32 %v995, %v1267
          %v1269 = vpop.f32.mrf.mxu0
          %v1270 = vpop.f32.mrf.mxu0
          %v1271 = vadd.f32 %v995, %v1270
          %v1272 = vpop.f32.mrf.mxu0
          %1273 = vmatprep.mubr.bf16.mxu0 0
          %1274 = vmatmul.mubr.bf16.gmra.mxu0 %v1208
          %v1275 = vpop.f32.mrf.mxu0
          %v1276 = vadd.f32 %v995, %v1275
          %v1277 = vpop.f32.mrf.mxu0
          %v1278 = vpop.f32.mrf.mxu0
          %v1279 = vadd.f32 %v995, %v1278
          %v1280 = vpop.f32.mrf.mxu0
          %1281 = vmatprep.mubr.bf16.mxu0 0
          %1282 = vmatmul.mubr.bf16.gmra.mxu0 %v1211
          %v1283 = vpop.f32.mrf.mxu0
          %v1284 = vadd.f32 %v995, %v1283
          %v1285 = vpop.f32.mrf.mxu0
          %v1286 = vpop.f32.mrf.mxu0
          %v1287 = vadd.f32 %v995, %v1286
          %v1288 = vpop.f32.mrf.mxu0
          %1289 = vmatprep.mubr.bf16.mxu0 0
          %1290 = vmatmul.mubr.bf16.gmra.mxu0 %v1214
          %v1291 = vpop.f32.mrf.mxu0
          %v1292 = vadd.f32 %v995, %v1291
          %v1293 = vpop.f32.mrf.mxu0
          %v1294 = vpop.f32.mrf.mxu0
          %v1295 = vadd.f32 %v995, %v1294
          %v1296 = vpop.f32.mrf.mxu0
          %1297 = vmatprep.mubr.bf16.mxu0 0
          %1298 = vmatmul.mubr.bf16.gmra.mxu0 %v1217
          %v1299 = vpop.f32.mrf.mxu0
          %v1300 = vadd.f32 %v995, %v1299
          %v1301 = vpop.f32.mrf.mxu0
          %v1302 = vpop.f32.mrf.mxu0
          %v1303 = vadd.f32 %v995, %v1302
          %v1304 = vpop.f32.mrf.mxu0
          %1305 = vmatprep.mubr.bf16.mxu0 0
          %1306 = vmatmul.mubr.bf16.gmra.mxu0 %v1220
          %v1307 = vpop.f32.mrf.mxu0
          %v1308 = vadd.f32 %v995, %v1307
          %v1309 = vpop.f32.mrf.mxu0
          %v1310 = vpop.f32.mrf.mxu0
          %v1311 = vadd.f32 %v995, %v1310
          %v1312 = vpop.f32.mrf.mxu0
          %1313 = vmatprep.mubr.bf16.mxu0 0
          %1314 = vmatmul.mubr.bf16.gmra.mxu0 %v1223
          %v1315 = vpop.f32.mrf.mxu0
          %v1316 = vadd.f32 %v995, %v1315
          %v1317 = vpop.f32.mrf.mxu0
          %v1318 = vpop.f32.mrf.mxu0
          %v1319 = vadd.f32 %v995, %v1318
          %v1320 = vpop.f32.mrf.mxu0
          %1321 = vdwg.mxu0
          %vm1322 = vcmp.gt.f32.partialorder %v1260, 0.0
          %vm1323 = vcmp.gt.f32.partialorder %v1263, 0.0
          %vm1324 = vcmp.gt.f32.partialorder %v1268, 0.0
          %vm1325 = vcmp.gt.f32.partialorder %v1271, 0.0
          %vm1326 = vcmp.gt.f32.partialorder %v1276, 0.0
          %vm1327 = vcmp.gt.f32.partialorder %v1279, 0.0
          %vm1328 = vcmp.gt.f32.partialorder %v1284, 0.0
          %vm1329 = vcmp.gt.f32.partialorder %v1287, 0.0
          %vm1330 = vcmp.gt.f32.partialorder %v1292, 0.0
          %vm1331 = vcmp.gt.f32.partialorder %v1295, 0.0
          %vm1332 = vcmp.gt.f32.partialorder %v1300, 0.0
          %vm1333 = vcmp.gt.f32.partialorder %v1303, 0.0
          %vm1334 = vcmp.gt.f32.partialorder %v1308, 0.0
          %vm1335 = vcmp.gt.f32.partialorder %v1311, 0.0
          %vm1336 = vcmp.gt.f32.partialorder %v1316, 0.0
          %vm1337 = vcmp.gt.f32.partialorder %v1319, 0.0
          %v1338 = vmul.f32 %v1143, %v1260
          %v1339 = vmul.f32 %v1143, %v1263
          %v1340 = vmul.f32 %v1143, %v1268
          %v1341 = vmul.f32 %v1143, %v1271
          %v1342 = vmul.f32 %v1143, %v1276
          %v1343 = vmul.f32 %v1143, %v1279
          %v1344 = vmul.f32 %v1143, %v1284
          %v1345 = vmul.f32 %v1143, %v1287
          %v1346 = vmul.f32 %v1143, %v1292
          %v1347 = vmul.f32 %v1143, %v1295
          %v1348 = vmul.f32 %v1143, %v1300
          %v1349 = vmul.f32 %v1143, %v1303
          %v1350 = vmul.f32 %v1143, %v1308
          %v1351 = vmul.f32 %v1143, %v1311
          %v1352 = vmul.f32 %v1143, %v1316
          %v1353 = vmul.f32 %v1143, %v1319
          %v1354 = vsel %vm1322, %v1260, %v1338
          %v1355 = vsel %vm1323, %v1263, %v1339
          %v1356 = vsel %vm1324, %v1268, %v1340
          %v1357 = vsel %vm1325, %v1271, %v1341
          %v1358 = vsel %vm1326, %v1276, %v1342
          %v1359 = vsel %vm1327, %v1279, %v1343
          %v1360 = vsel %vm1328, %v1284, %v1344
          %v1361 = vsel %vm1329, %v1287, %v1345
          %v1362 = vsel %vm1330, %v1292, %v1346
          %v1363 = vsel %vm1331, %v1295, %v1347
          %v1364 = vsel %vm1332, %v1300, %v1348
          %v1365 = vsel %vm1333, %v1303, %v1349
          %v1366 = vsel %vm1334, %v1308, %v1350
          %v1367 = vsel %vm1335, %v1311, %v1351
          %v1368 = vsel %vm1336, %v1316, %v1352
          %v1369 = vsel %vm1337, %v1319, %v1353
          %v1370 = vpack.c.bf16 %v1162, %v1161
          %v1371 = vpack.c.bf16 %v1164, %v1163
          %v1372 = vpack.c.bf16 %v1166, %v1165
          %v1373 = vpack.c.bf16 %v1168, %v1167
          %v1374 = vpack.c.bf16 %v1170, %v1169
          %v1375 = vpack.c.bf16 %v1172, %v1171
          %v1376 = vpack.c.bf16 %v1174, %v1173
          %v1377 = vpack.c.bf16 %v1176, %v1175
          %v1378 = vld [vmem:[%s6] sm:$0xf]
          %v1379 = vld [vmem:[%s6 + $0x4] sm:$0xf]
          %v1380 = vld [vmem:[%s6 + $0x8] sm:$0xf]
          %v1381 = vld [vmem:[%s6 + $0xc] sm:$0xf]
          %v1382 = vld [vmem:[%s6 + $0x10] sm:$0xf]
          %v1383 = vld [vmem:[%s6 + $0x14] sm:$0xf]
          %v1384 = vld [vmem:[%s6 + $0x18] sm:$0xf]
          %v1385 = vld [vmem:[%s6 + $0x1c] sm:$0xf]
          %v1386 = vld [vmem:[%s6 + $0x20] sm:$0xf]
          %v1387 = vld [vmem:[%s6 + $0x24] sm:$0xf]
          %v1388 = vld [vmem:[%s6 + $0x28] sm:$0xf]
          %v1389 = vld [vmem:[%s6 + $0x2c] sm:$0xf]
          %v1390 = vld [vmem:[%s6 + $0x30] sm:$0xf]
          %v1391 = vld [vmem:[%s6 + $0x34] sm:$0xf]
          %v1392 = vld [vmem:[%s6 + $0x38] sm:$0xf]
          %v1393 = vld [vmem:[%s6 + $0x3c] sm:$0xf]
          %v1394 = vpack.c.bf16 %v1355, %v1354
          %v1395 = vpack.c.bf16 %v1357, %v1356
          %v1396 = vpack.c.bf16 %v1359, %v1358
          %v1397 = vpack.c.bf16 %v1361, %v1360
          %v1398 = vpack.c.bf16 %v1363, %v1362
          %v1399 = vpack.c.bf16 %v1365, %v1364
          %v1400 = vpack.c.bf16 %v1367, %v1366
          %v1401 = vpack.c.bf16 %v1369, %v1368
          %v1402 = vld [vmem:[%s7] sm:$0xf]
          %v1403 = vld [vmem:[%s7 + $0x4] sm:$0xf]
          %v1404 = vld [vmem:[%s7 + $0x8] sm:$0xf]
          %v1405 = vld [vmem:[%s7 + $0xc] sm:$0xf]
          %v1406 = vld [vmem:[%s7 + $0x10] sm:$0xf]
          %v1407 = vld [vmem:[%s7 + $0x14] sm:$0xf]
          %v1408 = vld [vmem:[%s7 + $0x18] sm:$0xf]
          %v1409 = vld [vmem:[%s7 + $0x1c] sm:$0xf]
          %v1410 = vld [vmem:[%s7 + $0x20] sm:$0xf]
          %v1411 = vld [vmem:[%s7 + $0x24] sm:$0xf]
          %v1412 = vld [vmem:[%s7 + $0x28] sm:$0xf]
          %v1413 = vld [vmem:[%s7 + $0x2c] sm:$0xf]
          %v1414 = vld [vmem:[%s7 + $0x30] sm:$0xf]
          %v1415 = vld [vmem:[%s7 + $0x34] sm:$0xf]
          %v1416 = vld [vmem:[%s7 + $0x38] sm:$0xf]
          %v1417 = vld [vmem:[%s7 + $0x3c] sm:$0xf]
          %v1434 = vunpack.c.l.b16 %v1402
          %v1435 = vunpack.c.l.b16 %v1403
          %v1436 = vunpack.c.l.b16 %v1404
          %v1437 = vunpack.c.l.b16 %v1405
          %v1438 = vunpack.c.l.b16 %v1406
          %v1439 = vunpack.c.l.b16 %v1407
          %v1440 = vunpack.c.l.b16 %v1408
          %v1441 = vunpack.c.l.b16 %v1409
          %v1442 = vunpack.c.l.b16 %v1410
          %v1443 = vunpack.c.l.b16 %v1411
          %v1444 = vunpack.c.l.b16 %v1412
          %v1445 = vunpack.c.l.b16 %v1413
          %v1446 = vunpack.c.l.b16 %v1414
          %v1447 = vunpack.c.l.b16 %v1415
          %v1448 = vunpack.c.l.b16 %v1416
          %v1449 = vunpack.c.l.b16 %v1417
          %v1450 = vpack.c.b16 %v1435, %v1434
          %v1451 = vpack.c.b16 %v1437, %v1436
          %v1452 = vpack.c.b16 %v1439, %v1438
          %v1453 = vpack.c.b16 %v1441, %v1440
          %v1454 = vpack.c.b16 %v1443, %v1442
          %v1455 = vpack.c.b16 %v1445, %v1444
          %v1456 = vpack.c.b16 %v1447, %v1446
          %v1457 = vpack.c.b16 %v1449, %v1448
          %1466 = vmatprep.subr.bf16.mxu0 0
          %1467 = vmatpush1.bf16.msra.mxu0 %v1457
          %1468 = vmatprep.subr.bf16.mxu0 0
          %1469 = vmatpush1.bf16.msra.mxu0 %v1456
          %1470 = vmatprep.subr.bf16.mxu0 0
          %1471 = vmatpush1.bf16.msra.mxu0 %v1455
          %1472 = vmatprep.subr.bf16.mxu0 0
          %1473 = vmatpush1.bf16.msra.mxu0 %v1454
          %1474 = vmatprep.subr.bf16.mxu0 0
          %1475 = vmatpush1.bf16.msra.mxu0 %v1453
          %1476 = vmatprep.subr.bf16.mxu0 0
          %1477 = vmatpush1.bf16.msra.mxu0 %v1452
          %1478 = vmatprep.subr.bf16.mxu0 0
          %1479 = vmatpush1.bf16.msra.mxu0 %v1451
          %1480 = vmatprep.subr.bf16.mxu0 0
          %1481 = vmatpush1.bf16.msra.mxu0 %v1450
          %1482 = vmatprep.subr.bf16.mxu0 0
          %1483 = vmatpush2.bf16.msra.mxu0 0
          %1484 = vmatprep.subr.bf16.mxu0 0
          %1485 = vmatpush2.bf16.msra.mxu0 0
          %1486 = vmatprep.subr.bf16.mxu0 0
          %1487 = vmatpush2.bf16.msra.mxu0 0
          %1488 = vmatprep.subr.bf16.mxu0 0
          %1489 = vmatpush2.bf16.msra.mxu0 0
          %1490 = vmatprep.subr.bf16.mxu0 0
          %1491 = vmatpush2.bf16.msra.mxu0 0
          %1492 = vmatprep.subr.bf16.mxu0 0
          %1493 = vmatpush2.bf16.msra.mxu0 0
          %1494 = vmatprep.subr.bf16.mxu0 0
          %1495 = vmatpush2.bf16.msra.mxu0 0
          %1496 = vmatprep.subr.bf16.mxu0 0
          %1497 = vmatpush2.bf16.msra.mxu0 0
          %1498 = vmatprep.mubr.bf16.mxu0 0
          %1499 = vmatmul.mubr.bf16.gmra.mxu0 %v1394
          %v1500 = vpop.f32.mrf.mxu0
          %v1501 = vadd.f32 0.0, %v1500
          %v1502 = vpop.f32.mrf.mxu0
          %v1503 = vpop.f32.mrf.mxu0
          %v1504 = vadd.f32 0.0, %v1503
          %v1505 = vpop.f32.mrf.mxu0
          %1506 = vmatprep.mubr.bf16.mxu0 0
          %1507 = vmatmul.mubr.bf16.gmra.mxu0 %v1395
          %v1508 = vpop.f32.mrf.mxu0
          %v1509 = vadd.f32 0.0, %v1508
          %v1510 = vpop.f32.mrf.mxu0
          %v1511 = vpop.f32.mrf.mxu0
          %v1512 = vadd.f32 0.0, %v1511
          %v1513 = vpop.f32.mrf.mxu0
          %1514 = vmatprep.mubr.bf16.mxu0 0
          %1515 = vmatmul.mubr.bf16.gmra.mxu0 %v1396
          %v1516 = vpop.f32.mrf.mxu0
          %v1517 = vadd.f32 0.0, %v1516
          %v1518 = vpop.f32.mrf.mxu0
          %v1519 = vpop.f32.mrf.mxu0
          %v1520 = vadd.f32 0.0, %v1519
          %v1521 = vpop.f32.mrf.mxu0
          %1522 = vmatprep.mubr.bf16.mxu0 0
          %1523 = vmatmul.mubr.bf16.gmra.mxu0 %v1397
          %v1524 = vpop.f32.mrf.mxu0
          %v1525 = vadd.f32 0.0, %v1524
          %v1526 = vpop.f32.mrf.mxu0
          %v1527 = vpop.f32.mrf.mxu0
          %v1528 = vadd.f32 0.0, %v1527
          %v1529 = vpop.f32.mrf.mxu0
          %1530 = vmatprep.mubr.bf16.mxu0 0
          %1531 = vmatmul.mubr.bf16.gmra.mxu0 %v1398
          %v1532 = vpop.f32.mrf.mxu0
          %v1533 = vadd.f32 0.0, %v1532
          %v1534 = vpop.f32.mrf.mxu0
          %v1535 = vpop.f32.mrf.mxu0
          %v1536 = vadd.f32 0.0, %v1535
          %v1537 = vpop.f32.mrf.mxu0
          %1538 = vmatprep.mubr.bf16.mxu0 0
          %1539 = vmatmul.mubr.bf16.gmra.mxu0 %v1399
          %v1540 = vpop.f32.mrf.mxu0
          %v1541 = vadd.f32 0.0, %v1540
          %v1542 = vpop.f32.mrf.mxu0
          %v1543 = vpop.f32.mrf.mxu0
          %v1544 = vadd.f32 0.0, %v1543
          %v1545 = vpop.f32.mrf.mxu0
          %1546 = vmatprep.mubr.bf16.mxu0 0
          %1547 = vmatmul.mubr.bf16.gmra.mxu0 %v1400
          %v1548 = vpop.f32.mrf.mxu0
          %v1549 = vadd.f32 0.0, %v1548
          %v1550 = vpop.f32.mrf.mxu0
          %v1551 = vpop.f32.mrf.mxu0
          %v1552 = vadd.f32 0.0, %v1551
          %v1553 = vpop.f32.mrf.mxu0
          %1554 = vmatprep.mubr.bf16.mxu0 0
          %1555 = vmatmul.mubr.bf16.gmra.mxu0 %v1401
          %v1556 = vpop.f32.mrf.mxu0
          %v1557 = vadd.f32 0.0, %v1556
          %v1558 = vpop.f32.mrf.mxu0
          %v1559 = vpop.f32.mrf.mxu0
          %v1560 = vadd.f32 0.0, %v1559
          %v1561 = vpop.f32.mrf.mxu0
          %1562 = vdwg.mxu0
          %v1579 = vunpack.c.l.b16 %v1378
          %v1580 = vunpack.c.l.b16 %v1379
          %v1581 = vunpack.c.l.b16 %v1380
          %v1582 = vunpack.c.l.b16 %v1381
          %v1583 = vunpack.c.l.b16 %v1382
          %v1584 = vunpack.c.l.b16 %v1383
          %v1585 = vunpack.c.l.b16 %v1384
          %v1586 = vunpack.c.l.b16 %v1385
          %v1587 = vunpack.c.l.b16 %v1386
          %v1588 = vunpack.c.l.b16 %v1387
          %v1589 = vunpack.c.l.b16 %v1388
          %v1590 = vunpack.c.l.b16 %v1389
          %v1591 = vunpack.c.l.b16 %v1390
          %v1592 = vunpack.c.l.b16 %v1391
          %v1593 = vunpack.c.l.b16 %v1392
          %v1594 = vunpack.c.l.b16 %v1393
          %v1595 = vpack.c.b16 %v1580, %v1579
          %v1596 = vpack.c.b16 %v1582, %v1581
          %v1597 = vpack.c.b16 %v1584, %v1583
          %v1598 = vpack.c.b16 %v1586, %v1585
          %v1599 = vpack.c.b16 %v1588, %v1587
          %v1600 = vpack.c.b16 %v1590, %v1589
          %v1601 = vpack.c.b16 %v1592, %v1591
          %v1602 = vpack.c.b16 %v1594, %v1593
          %1611 = vmatprep.subr.bf16.mxu0 0
          %1612 = vmatpush1.bf16.msra.mxu0 %v1602
          %1613 = vmatprep.subr.bf16.mxu0 0
          %1614 = vmatpush1.bf16.msra.mxu0 %v1601
          %1615 = vmatprep.subr.bf16.mxu0 0
          %1616 = vmatpush1.bf16.msra.mxu0 %v1600
          %1617 = vmatprep.subr.bf16.mxu0 0
          %1618 = vmatpush1.bf16.msra.mxu0 %v1599
          %1619 = vmatprep.subr.bf16.mxu0 0
          %1620 = vmatpush1.bf16.msra.mxu0 %v1598
          %1621 = vmatprep.subr.bf16.mxu0 0
          %1622 = vmatpush1.bf16.msra.mxu0 %v1597
          %1623 = vmatprep.subr.bf16.mxu0 0
          %1624 = vmatpush1.bf16.msra.mxu0 %v1596
          %1625 = vmatprep.subr.bf16.mxu0 0
          %1626 = vmatpush1.bf16.msra.mxu0 %v1595
          %1627 = vmatprep.subr.bf16.mxu0 0
          %1628 = vmatpush2.bf16.msra.mxu0 0
          %1629 = vmatprep.subr.bf16.mxu0 0
          %1630 = vmatpush2.bf16.msra.mxu0 0
          %1631 = vmatprep.subr.bf16.mxu0 0
          %1632 = vmatpush2.bf16.msra.mxu0 0
          %1633 = vmatprep.subr.bf16.mxu0 0
          %1634 = vmatpush2.bf16.msra.mxu0 0
          %1635 = vmatprep.subr.bf16.mxu0 0
          %1636 = vmatpush2.bf16.msra.mxu0 0
          %1637 = vmatprep.subr.bf16.mxu0 0
          %1638 = vmatpush2.bf16.msra.mxu0 0
          %1639 = vmatprep.subr.bf16.mxu0 0
          %1640 = vmatpush2.bf16.msra.mxu0 0
          %1641 = vmatprep.subr.bf16.mxu0 0
          %1642 = vmatpush2.bf16.msra.mxu0 0
          %1643 = vmatprep.mubr.bf16.mxu0 0
          %1644 = vmatmul.mubr.bf16.gmra.mxu0 %v1370
          %v1645 = vpop.f32.mrf.mxu0
          %v1646 = vadd.f32 %v1501, %v1645
          %v1647 = vpop.f32.mrf.mxu0
          %v1648 = vpop.f32.mrf.mxu0
          %v1649 = vadd.f32 %v1504, %v1648
          %v1650 = vpop.f32.mrf.mxu0
          %1651 = vmatprep.mubr.bf16.mxu0 0
          %1652 = vmatmul.mubr.bf16.gmra.mxu0 %v1371
          %v1653 = vpop.f32.mrf.mxu0
          %v1654 = vadd.f32 %v1509, %v1653
          %v1655 = vpop.f32.mrf.mxu0
          %v1656 = vpop.f32.mrf.mxu0
          %v1657 = vadd.f32 %v1512, %v1656
          %v1658 = vpop.f32.mrf.mxu0
          %1659 = vmatprep.mubr.bf16.mxu0 0
          %1660 = vmatmul.mubr.bf16.gmra.mxu0 %v1372
          %v1661 = vpop.f32.mrf.mxu0
          %v1662 = vadd.f32 %v1517, %v1661
          %v1663 = vpop.f32.mrf.mxu0
          %v1664 = vpop.f32.mrf.mxu0
          %v1665 = vadd.f32 %v1520, %v1664
          %v1666 = vpop.f32.mrf.mxu0
          %1667 = vmatprep.mubr.bf16.mxu0 0
          %1668 = vmatmul.mubr.bf16.gmra.mxu0 %v1373
          %v1669 = vpop.f32.mrf.mxu0
          %v1670 = vadd.f32 %v1525, %v1669
          %v1671 = vpop.f32.mrf.mxu0
          %v1672 = vpop.f32.mrf.mxu0
          %v1673 = vadd.f32 %v1528, %v1672
          %v1674 = vpop.f32.mrf.mxu0
          %1675 = vmatprep.mubr.bf16.mxu0 0
          %1676 = vmatmul.mubr.bf16.gmra.mxu0 %v1374
          %v1677 = vpop.f32.mrf.mxu0
          %v1678 = vadd.f32 %v1533, %v1677
          %v1679 = vpop.f32.mrf.mxu0
          %v1680 = vpop.f32.mrf.mxu0
          %v1681 = vadd.f32 %v1536, %v1680
          %v1682 = vpop.f32.mrf.mxu0
          %1683 = vmatprep.mubr.bf16.mxu0 0
          %1684 = vmatmul.mubr.bf16.gmra.mxu0 %v1375
          %v1685 = vpop.f32.mrf.mxu0
          %v1686 = vadd.f32 %v1541, %v1685
          %v1687 = vpop.f32.mrf.mxu0
          %v1688 = vpop.f32.mrf.mxu0
          %v1689 = vadd.f32 %v1544, %v1688
          %v1690 = vpop.f32.mrf.mxu0
          %1691 = vmatprep.mubr.bf16.mxu0 0
          %1692 = vmatmul.mubr.bf16.gmra.mxu0 %v1376
          %v1693 = vpop.f32.mrf.mxu0
          %v1694 = vadd.f32 %v1549, %v1693
          %v1695 = vpop.f32.mrf.mxu0
          %v1696 = vpop.f32.mrf.mxu0
          %v1697 = vadd.f32 %v1552, %v1696
          %v1698 = vpop.f32.mrf.mxu0
          %1699 = vmatprep.mubr.bf16.mxu0 0
          %1700 = vmatmul.mubr.bf16.gmra.mxu0 %v1377
          %v1701 = vpop.f32.mrf.mxu0
          %v1702 = vadd.f32 %v1557, %v1701
          %v1703 = vpop.f32.mrf.mxu0
          %v1704 = vpop.f32.mrf.mxu0
          %v1705 = vadd.f32 %v1560, %v1704
          %v1706 = vpop.f32.mrf.mxu0
          %1707 = vdwg.mxu0
          %v1708 = vld [vmem:[%s8] sm:$0x1]
          %v1710 = vlaneseq
          %v1711 = vshrl.u32 %v1710, 7
          %v1712 = vsub.s32 0, %v1711
          %v1713 = vrot.slane %v1708, %v1712
          %v1715 = vadd.f32 %v1646, %v1713
          %v1716 = vadd.f32 %v1649, %v1713
          %v1717 = vadd.f32 %v1654, %v1713
          %v1718 = vadd.f32 %v1657, %v1713
          %v1719 = vadd.f32 %v1662, %v1713
          %v1720 = vadd.f32 %v1665, %v1713
          %v1721 = vadd.f32 %v1670, %v1713
          %v1722 = vadd.f32 %v1673, %v1713
          %v1723 = vadd.f32 %v1678, %v1713
          %v1724 = vadd.f32 %v1681, %v1713
          %v1725 = vadd.f32 %v1686, %v1713
          %v1726 = vadd.f32 %v1689, %v1713
          %v1727 = vadd.f32 %v1694, %v1713
          %v1728 = vadd.f32 %v1697, %v1713
          %v1729 = vadd.f32 %v1702, %v1713
          %v1730 = vadd.f32 %v1705, %v1713
          %1731 = vst [vmem:[%s429] sm:$0xff] %v1715
          %1732 = vst [vmem:[%s429 + $0x8] sm:$0xff] %v1716
          %1733 = vst [vmem:[%s429 + $0x10] sm:$0xff] %v1717
          %1734 = vst [vmem:[%s429 + $0x18] sm:$0xff] %v1718
          %1735 = vst [vmem:[%s429 + $0x20] sm:$0xff] %v1719
          %1736 = vst [vmem:[%s429 + $0x28] sm:$0xff] %v1720
          %1737 = vst [vmem:[%s429 + $0x30] sm:$0xff] %v1721
          %1738 = vst [vmem:[%s429 + $0x38] sm:$0xff] %v1722
          %1739 = vst [vmem:[%s429 + $0x40] sm:$0xff] %v1723
          %1740 = vst [vmem:[%s429 + $0x48] sm:$0xff] %v1724
          %1741 = vst [vmem:[%s429 + $0x50] sm:$0xff] %v1725
          %1742 = vst [vmem:[%s429 + $0x58] sm:$0xff] %v1726
          %1743 = vst [vmem:[%s429 + $0x60] sm:$0xff] %v1727
          %1744 = vst [vmem:[%s429 + $0x68] sm:$0xff] %v1728
          %1745 = vst [vmem:[%s429 + $0x70] sm:$0xff] %v1729
          %1746 = vst [vmem:[%s429 + $0x78] sm:$0xff] %v1730
        $region72: #{tpu_custom_call.1} parent=55 // pred_fallthru
          _
        %s1747 = sand.u32 %s259, 1
        %s1748 = scalar_lea.sflag [#allocation6], %s1747
        %s1749 = sand.u32 %s259, 1
        %s1750 = smul.addr %s1749, 128
        %s1751 = scalar_lea.vmem [#allocation9], %s1750
        // Predicated region
        $region73: #{tpu_custom_call.1} parent=55 // pred_check
          %p1752 = pneg %p269
        $region74: #{tpu_custom_call.1} parent=55 // pred_check_branch
          %1754 = sbr.rel (%p1752) target = $region76
        $region75: #{tpu_custom_call.1} parent=55 // pred_region
          %s1755 = smul.u32 16, %s33
          %s1757 = ssub.s32 2048, 2048
          %1758 = vsyncadd %s1748, %s1757
          %s1759 = smul.addr %s1755, 128
          %s1760 = scalar_lea.hbm %s9, %s1759
          %s1761 = sshll.u32 %s1751, 4
          %s1762 = int_to_ptr.vmem [resolvable:$true] %s1761
          %1767 = dma.vmem_to_hbm [thread:$0]  %s1762, 2048, %s1760, %s1748, 128, 128, 8
        $region76: #{tpu_custom_call.1} parent=55 // pred_fallthru
          _
      $region56: #{tpu_custom_call.1} parent=5 // pred_fallthru
        _
      %p1768 = scmp.le.s32.totalorder 2, %s24
      // Predicated region
      $region77: #{tpu_custom_call.1} parent=5 // pred_check
        %p1769 = pneg %p1768
      $region78: #{tpu_custom_call.1} parent=5 // pred_check_branch
        %1771 = sbr.rel (%p1769) target = $region80
      $region79: #{tpu_custom_call.1} parent=5 // pred_region
        %s1772 = ssub.s32 %s24, 2
        // Predicated region
        $region81: #{tpu_custom_call.1} parent=79 // pred_check
          %p1773 = pneg %p275
        $region82: #{tpu_custom_call.1} parent=79 // pred_check_branch
          %1775 = sbr.rel (%p1773) target = $region84
        $region83: #{tpu_custom_call.1} parent=79 // pred_region
          %s1776 = sand.u32 %s260, 1
          %s1777 = scalar_lea.sflag [#allocation6], %s1776
          %s1778 = sand.u32 %s260, 1
          %s1779 = smul.addr %s1778, 128
          %s1780 = scalar_lea.vmem [#allocation9], %s1779
          %1781 = dma.done %s1777, 2048
        $region84: #{tpu_custom_call.1} parent=79 // pred_fallthru
          _
      $region80: #{tpu_custom_call.1} parent=5 // pred_fallthru
        _
    $region6: #{tpu_custom_call.1} parent=1 // loop_footer
      %s28 = sadd.s32 1, %s24
    $region7: #{tpu_custom_call.1} parent=1 // loop_footer_branch
      %23 = sbr.rel target = $region3
    $region8: #{tpu_custom_call.1} parent=1 // loop_exit
      _
    %1782 = vsyncpa [#allocation5], 1
    %s1783 = scalar_lea.sflag [#allocation5], 1
    %1784 = vsyncpa %s1783, 1
    %1785 = vsyncpa [#allocation8], 1
    %s1786 = scalar_lea.sflag [#allocation8], 1
    %1787 = vsyncpa %s1786, 1
    %1788 = vsyncpa [#allocation6], 1
    %s1789 = scalar_lea.sflag [#allocation6], 1
    %1790 = vsyncpa %s1789, 1

</llo_original>
